<compile_context>
chip_gen: v6e
topology: v6e:2x2x1
jax: 0.10.0
libtpu: 0.0.40
codegen_flags: <defaults>
</compile_context>

<pallas_src>
import functools

import jax
import jax.numpy as jnp
from jax.experimental import pallas as pl
from jax.experimental.pallas import tpu as pltpu


_TARGET_BLOCK_BYTES = 6 * 1024 * 1024   # per-step input block target (all gens)
_MAX_TW = 128                           # output-column tile = one vreg of lanes


def _sublane_unit(itemsize):
    # Native sublane tile per dtype width: f32 -> 8, bf16 -> 16, int8/fp8 -> 32.
    return {4: 8, 2: 16, 1: 32}.get(int(itemsize), 8)


def _largest_divisor_leq(n, cap):
    cap = max(1, min(n, cap))
    for d in range(cap, 0, -1):
        if n % d == 0:
            return d
    return 1


def _vmem_limit_bytes():
    mib = 1024 * 1024
    try:
        cap = pltpu.get_tpu_info().vmem_capacity_bytes
        return int(min(64 * mib, max(32 * mib, (cap * 3) // 4)))
    except Exception:
        return 48 * mib   # safe on every generation (v7x physical VMEM = 64 MiB)


def _maxpool2x2_kernel(x_ref, o_ref, *, w_valid, precision):
    # x_ref : (in_rows, wb) -- >= 2*R consecutive input rows of one column tile
    #                          of one group of merged planes
    # o_ref : (R, TW)       -- pooled rows/cols for this tile
    r, tw = o_ref.shape
    wb = x_ref.shape[1]
    dtype = x_ref.dtype

    # Vertical 2-window: even/odd rows via native sublane-strided loads.
    # TODO(synk): for bf16/int8 inputs verify (bundle dump) these lower to a
    # native strided vld; if not, load the full tile and pair rows via a
    # sublane roll + max instead.
    top = x_ref[pl.ds(0, r, stride=2), :]      # rows 0, 2, 4, ...
    bot = x_ref[pl.ds(1, r, stride=2), :]      # rows 1, 3, 5, ...
    row_max = jnp.maximum(top, bot)            # (R, wb)

    # Zero out columns beyond the valid pooling width 2*Wo.  This neutralises
    # Pallas padding of ragged last column tiles and the trailing odd column
    # (ceil_mode=False) before the selection matmuls (0 * garbage stays 0).
    col = (jax.lax.broadcasted_iota(jnp.int32, (1, wb), 1)
           + pl.program_id(2) * wb)
    row_max = jnp.where(col < w_valid, row_max, jnp.zeros_like(row_max))

    # 0/1 column-selection matrices, built in-kernel (cheap VPU filler hidden
    # under the DMA; no extra double-buffered input streams).
    wi = jax.lax.broadcasted_iota(jnp.int32, (wb, tw), 0)
    wj = jax.lax.broadcasted_iota(jnp.int32, (wb, tw), 1)
    p_even = (wi == 2 * wj).astype(dtype)
    p_odd = (wi == 2 * wj + 1).astype(dtype)

    # Horizontal 2-window: pick even/odd columns on the (otherwise idle) MXU,
    # then take the elementwise max.
    # TODO(synk): a single matmul (pair = max(row_max, pltpu.roll(row_max,
    #             2*tw - 1, axis=-1)); even-select only) would halve the MXU
    #             pushes once the roll shift direction is validated on HW.
    # TODO(synk): selection-by-matmul assumes finite inputs; +-inf / NaN
    #             inputs give 0*inf = NaN, diverging from PyTorch MaxPool2d.
    even = jnp.dot(row_max, p_even,
                   preferred_element_type=jnp.float32, precision=precision)
    odd = jnp.dot(row_max, p_odd,
                  preferred_element_type=jnp.float32, precision=precision)
    o_ref[...] = jnp.maximum(even, odd).astype(o_ref.dtype)


def downsample_block(x_nchw):
    """Forward pass of DownSampleBlock: MaxPool2d((2, 2), stride=2), NCHW in/out."""
    assert x_nchw.ndim == 4, "expected NCHW input"
    assert jnp.issubdtype(x_nchw.dtype, jnp.floating), "floating inputs only"
    b, c, h, w = x_nchw.shape
    ho, wo = h // 2, w // 2             # ceil_mode=False -> floor division
    assert ho >= 1 and wo >= 1, "spatial dims must be >= 2"

    dtype = x_nchw.dtype
    itemsize = x_nchw.dtype.itemsize
    n = b * c

    # ---- column tiling (selector footprint stays O(TW^2), lanes stay dense) --
    if wo <= _MAX_TW:
        tw, wb, n_col = wo, w, 1        # one tile, full (possibly odd) width
    else:
        tw = _MAX_TW
        wb = 2 * tw                     # multiple of 128 -> always legal
        n_col = pl.cdiv(wo, tw)         # ragged tail handled by in-kernel mask

    # ---- plane packing for small feature maps (free row-major reshape) ------
    plane_bytes = h * w * itemsize
    if (h % 2 == 0) and n > 1 and plane_bytes <= _TARGET_BLOCK_BYTES:
        nb = _largest_divisor_leq(n, _TARGET_BLOCK_BYTES // max(1, plane_bytes))
    else:
        nb = 1                          # odd H or large planes: no packing
    g = n // nb
    hm = nb * h                         # merged input rows per group
    hom = nb * ho                       # merged output rows per group

    # ---- row blocking (dtype-aware sublane multiple, cdiv grid, no blow-up) -
    unit = _sublane_unit(itemsize)
    row_budget = max(1, _TARGET_BLOCK_BYTES // max(1, 2 * wb * itemsize))
    if row_budget >= hom:
        rm = hom                        # whole (merged) height in one block
        in_rows = hm                    # full dim: handles odd H with no crop
        n_row = 1
    else:
        rm = max(unit, (row_budget // unit) * unit)
        in_rows = 2 * rm                # multiple of 16/32/64 -> always legal
        n_row = pl.cdiv(hom, rm)        # ragged last block: padded rows only
                                        # feed output rows that are dropped

    # Reshape only (no transpose, no crop): NCHW -> (groups, merged rows, W).
    x3 = x_nchw.reshape(g, hm, w)

    precision = (jax.lax.Precision.HIGHEST
                 if x_nchw.dtype == jnp.float32 else jax.lax.Precision.DEFAULT)
    kernel = functools.partial(_maxpool2x2_kernel,
                               w_valid=2 * wo, precision=precision)

    macs = 2 * (n * ho) * wb * wo       # two selection matmuls, K = wb per tile
    cost = pl.CostEstimate(
        flops=int(2 * macs + 4 * n * ho * wo),
        transcendentals=0,
        bytes_accessed=int(x_nchw.size * itemsize + n * ho * wo * itemsize))

    out3 = pl.pallas_call(
        kernel,
        out_shape=jax.ShapeDtypeStruct((g, hom, wo), dtype),
        grid=(g, n_row, n_col),
        in_specs=[
            pl.BlockSpec((None, in_rows, wb), lambda gi, ri, ci: (gi, ri, ci)),
        ],
        out_specs=pl.BlockSpec((None, rm, tw), lambda gi, ri, ci: (gi, ri, ci)),
        compiler_params=pltpu.CompilerParams(
            dimension_semantics=("parallel", "parallel", "parallel"),
            # Budget: 2 x ~6 MiB input blocks + 2 x ~1.5 MiB output blocks
            # + ~6-9 MiB in-kernel intermediates (row_max, even/odd in f32)
            # ~= 25 MiB, under the 48-64 MiB generation-aware scoped limit.
            vmem_limit_bytes=_vmem_limit_bytes(),
        ),
        cost_estimate=cost,
    )(x3)

    return out3.reshape(b, c, ho, wo)


def _reference_maxpool(x_nchw):
    b, c, h, w = x_nchw.shape
    return x_nchw.reshape(b, c, h // 2, 2, w // 2, 2).max(axis=(3, 5))


if __name__ == "__main__":
    key = jax.random.PRNGKey(0)
    x = jax.random.normal(key, (2, 4, 16, 16), dtype=jnp.float32)  # NCHW

    out = jax.block_until_ready(downsample_block(x))

    ref = _reference_maxpool(x)
    assert out.shape == (2, 4, 8, 8), out.shape
    assert out.dtype == x.dtype
    assert jnp.allclose(out, ref, atol=1e-5, rtol=1e-5), \
        "Pallas maxpool mismatch vs reference"

    print("KERNEL_OK")
</pallas_src>

<mosaic_0001>
module attributes {stable_mosaic.version = 11 : i64} {
  func.func @_maxpool2x2_kernel(%arg0: i32, %arg1: i32, %arg2: i32, %arg3: memref<1x128x16xf32, #tpu.memory_space<vmem>>, %arg4: memref<1x64x8xf32, #tpu.memory_space<vmem>>) attributes {dimension_semantics = [#tpu.dimension_semantics<parallel>, #tpu.dimension_semantics<parallel>, #tpu.dimension_semantics<parallel>], iteration_bounds = array<i64: 1, 1, 1>, scalar_prefetch = 0 : i64, scratch_operands = 0 : i64, tpu.core_type = #tpu.core_type<tc>, window_params = [{transform_indices = @transform_0, window_bounds = array<i64: 1, 128, 16>}, {transform_indices = @transform_1, window_bounds = array<i64: 1, 64, 8>}]} {
    %c0 = arith.constant 0 : index
    %c0_0 = arith.constant 0 : index
    %c0_1 = arith.constant 0 : index
    %0 = tpu.strided_load %arg3[%c0, %c0_0, %c0_1] {strides = array<i32: 1, 2, 1>} : memref<1x128x16xf32, #tpu.memory_space<vmem>>, vector<1x64x16xf32>
    %1 = vector.shape_cast %0 : vector<1x64x16xf32> to vector<64x16xf32>
    %c0_2 = arith.constant 0 : index
    %c1 = arith.constant 1 : index
    %c0_3 = arith.constant 0 : index
    %2 = tpu.strided_load %arg3[%c0_2, %c1, %c0_3] {strides = array<i32: 1, 2, 1>} : memref<1x128x16xf32, #tpu.memory_space<vmem>>, vector<1x64x16xf32>
    %3 = vector.shape_cast %2 : vector<1x64x16xf32> to vector<64x16xf32>
    %4 = arith.maximumf %1, %3 : vector<64x16xf32>
    %5 = tpu.iota {dimensions = array<i32: 1>} : vector<1x16xi32>
    %c16_i32 = arith.constant 16 : i32
    %6 = arith.muli %arg2, %c16_i32 : i32
    %7 = vector.broadcast %6 : i32 to vector<1x16xi32>
    %8 = arith.addi %5, %7 : vector<1x16xi32>
    %c16_i32_4 = arith.constant 16 : i32
    %9 = vector.broadcast %c16_i32_4 : i32 to vector<1x16xi32>
    %10 = arith.cmpi slt, %8, %9 : vector<1x16xi32>
    %cst = arith.constant 0.000000e+00 : f32
    %11 = vector.broadcast %cst : f32 to vector<64x16xf32>
    %12 = vector.shape_cast %10 : vector<1x16xi1> to vector<1x16xi1>
    %13 = vector.broadcast %12 : vector<1x16xi1> to vector<64x16xi1>
    %14 = arith.select %13, %4, %11 : vector<64x16xi1>, vector<64x16xf32>
    %15 = tpu.iota {dimensions = array<i32: 0>} : vector<16x8xi32>
    %16 = tpu.iota {dimensions = array<i32: 1>} : vector<16x8xi32>
    %c2_i32 = arith.constant 2 : i32
    %17 = vector.broadcast %c2_i32 : i32 to vector<16x8xi32>
    %18 = arith.muli %17, %16 : vector<16x8xi32>
    %19 = arith.cmpi eq, %15, %18 : vector<16x8xi32>
    %20 = arith.extui %19 : vector<16x8xi1> to vector<16x8xi32>
    %21 = arith.sitofp %20 : vector<16x8xi32> to vector<16x8xf32>
    %c2_i32_5 = arith.constant 2 : i32
    %22 = vector.broadcast %c2_i32_5 : i32 to vector<16x8xi32>
    %23 = arith.muli %22, %16 : vector<16x8xi32>
    %c1_i32 = arith.constant 1 : i32
    %24 = vector.broadcast %c1_i32 : i32 to vector<16x8xi32>
    %25 = arith.addi %23, %24 : vector<16x8xi32>
    %26 = arith.cmpi eq, %15, %25 : vector<16x8xi32>
    %27 = arith.extui %26 : vector<16x8xi1> to vector<16x8xi32>
    %28 = arith.sitofp %27 : vector<16x8xi32> to vector<16x8xf32>
    %cst_6 = arith.constant dense<0.000000e+00> : vector<64x8xf32>
    %29 = tpu.matmul %14, %21, %cst_6 {dimension_numbers = #tpu.dot_dimension_numbers<[1], [0], [0], [1], [0, 0, 1, 1], [], []>, precision = #tpu.contract_precision<fp32>} : vector<64x16xf32>, vector<16x8xf32>, vector<64x8xf32> -> vector<64x8xf32>
    %cst_7 = arith.constant dense<0.000000e+00> : vector<64x8xf32>
    %30 = tpu.matmul %14, %28, %cst_7 {dimension_numbers = #tpu.dot_dimension_numbers<[1], [0], [0], [1], [0, 0, 1, 1], [], []>, precision = #tpu.contract_precision<fp32>} : vector<64x16xf32>, vector<16x8xf32>, vector<64x8xf32> -> vector<64x8xf32>
    %31 = arith.maximumf %29, %30 : vector<64x8xf32>
    %c0_8 = arith.constant 0 : index
    %c0_9 = arith.constant 0 : index
    %c0_10 = arith.constant 0 : index
    %32 = vector.load %arg4[%c0_8, %c0_9, %c0_10] : memref<1x64x8xf32, #tpu.memory_space<vmem>>, vector<1x64x8xf32>
    %33 = vector.shape_cast %32 : vector<1x64x8xf32> to vector<64x8xf32>
    %34 = vector.shape_cast %31 : vector<64x8xf32> to vector<1x64x8xf32>
    tpu.vector_store %arg4[%c0_8, %c0_9, %c0_10], %34 {strides = array<i32>} : memref<1x64x8xf32, #tpu.memory_space<vmem>>, vector<1x64x8xf32>,
    return
  }
  func.func @transform_0(%arg0: i32, %arg1: i32, %arg2: i32) -> (i32, i32, i32) {
    %c0_i32 = arith.constant 0 : i32
    return %arg0, %arg1, %arg2 : i32, i32, i32
  }
  func.func @transform_1(%arg0: i32, %arg1: i32, %arg2: i32) -> (i32, i32, i32) {
    %c0_i32 = arith.constant 0 : i32
    return %arg0, %arg1, %arg2 : i32, i32, i32
  }
}

</mosaic_0001>

<llo_original>
// kernel: tpu_custom_call.1
$region0: #{tpu_custom_call.1}
  #allocation0 [shape = 'u32[]', space=smem, size = 0x4, offset = 0x4, fixed_abs, tag = 'smem constant byte address 0x4 - core index']
  #allocation1 [shape = 'u32[144,128]{1,0:T(1,128)}', space=vmem, size = 0x12000, scoped, tag = 'internal scratch']
  %s0 = inlined_call_operand.vmem [shape: f32[1,128,16], index: 0, kind: input, shape index: {}]
  %s1 = inlined_call_operand.vmem [shape: f32[1,64,8], index: 1, kind: output, shape index: {}]
  %s2 = sld [smem:[#allocation0]]
  $region14: #{tpu_custom_call.1} parent=0
    _
  %s4 = ssub.s32 1, %s2
  %s5 = scalar_select 0, %s4, %s2
  // Predicated region
  $region2: #{tpu_custom_call.1} parent=0 // pred_check
    _
  $region3: #{tpu_custom_call.1} parent=0 // pred_check_branch
    %7 = sbr.rel (0) target = $region5
  $region4: #{tpu_custom_call.1} parent=0 // pred_region
    _
  $region5: #{tpu_custom_call.1} parent=0 // pred_fallthru
    _
  %v8 = vld [vmem:[%s0] ss:$2 sm:$0xff]
  %s9 = scalar_lea.vmem %s0, 16
  %v10 = vld [vmem:[%s9] ss:$2 sm:$0xff]
  %s11 = scalar_lea.vmem %s0, 32
  %v12 = vld [vmem:[%s11] ss:$2 sm:$0xff]
  %s13 = scalar_lea.vmem %s0, 48
  %v14 = vld [vmem:[%s13] ss:$2 sm:$0xff]
  %s15 = scalar_lea.vmem %s0, 64
  %v16 = vld [vmem:[%s15] ss:$2 sm:$0xff]
  %s17 = scalar_lea.vmem %s0, 80
  %v18 = vld [vmem:[%s17] ss:$2 sm:$0xff]
  %s19 = scalar_lea.vmem %s0, 96
  %v20 = vld [vmem:[%s19] ss:$2 sm:$0xff]
  %s21 = scalar_lea.vmem %s0, 112
  %v22 = vld [vmem:[%s21] ss:$2 sm:$0xff]
  %s23 = scalar_lea.vmem %s0, 1
  %v24 = vld [vmem:[%s23] ss:$2 sm:$0xff]
  %s25 = scalar_lea.vmem %s0, 17
  %v26 = vld [vmem:[%s25] ss:$2 sm:$0xff]
  %s27 = scalar_lea.vmem %s0, 33
  %v28 = vld [vmem:[%s27] ss:$2 sm:$0xff]
  %s29 = scalar_lea.vmem %s0, 49
  %v30 = vld [vmem:[%s29] ss:$2 sm:$0xff]
  %s31 = scalar_lea.vmem %s0, 65
  %v32 = vld [vmem:[%s31] ss:$2 sm:$0xff]
  %s33 = scalar_lea.vmem %s0, 81
  %v34 = vld [vmem:[%s33] ss:$2 sm:$0xff]
  %s35 = scalar_lea.vmem %s0, 97
  %v36 = vld [vmem:[%s35] ss:$2 sm:$0xff]
  %s37 = scalar_lea.vmem %s0, 113
  %v38 = vld [vmem:[%s37] ss:$2 sm:$0xff]
  %v39 = vmax.f32 %v8, %v24
  %v40 = vmax.f32 %v10, %v26
  %v41 = vmax.f32 %v12, %v28
  %v42 = vmax.f32 %v14, %v30
  %v43 = vmax.f32 %v16, %v32
  %v44 = vmax.f32 %v18, %v34
  %v45 = vmax.f32 %v20, %v36
  %v46 = vmax.f32 %v22, %v38
  %v47 = vlaneseq
  %v48 = vand.u32 %v47, 127
  %s49 = smul.u32 0, 16
  %v50 = vstv %s49
  %v51 = vadd.s32 %v48, %v50
  %vm52 = vcmp.lt.s32.totalorder %v51, 16
  %v53 = vsel %vm52, 1, 0
  %vm54 = vcmp.eq.s32.totalorder %v53, 1
  %v55 = vsel %vm54, %v39, 0.0
  %v56 = vsel %vm54, %v40, 0.0
  %v57 = vsel %vm54, %v41, 0.0
  %v58 = vsel %vm54, %v42, 0.0
  %v59 = vsel %vm54, %v43, 0.0
  %v60 = vsel %vm54, %v44, 0.0
  %v61 = vsel %vm54, %v45, 0.0
  %v62 = vsel %vm54, %v46, 0.0
  %v63 = vlaneseq
  %v64 = vshrl.u32 %v63, 7
  %v65 = vadd.s32 %v64, 8
  %v66 = vmul.u32 %v48, 2
  %vm67 = vcmp.eq.s32.totalorder %v64, %v66
  %vm68 = vcmp.eq.s32.totalorder %v65, %v66
  %v69 = vsel %vm67, 1, 0
  %v70 = vsel %vm68, 1, 0
  %v71 = vcvt.s32.f32 %v69
  %v72 = vcvt.s32.f32 %v70
  %v73 = vadd.s32 %v66, 1
  %vm74 = vcmp.eq.s32.totalorder %v64, %v73
  %vm75 = vcmp.eq.s32.totalorder %v65, %v73
  %v76 = vsel %vm74, 1, 0
  %v77 = vsel %vm75, 1, 0
  %v78 = vcvt.s32.f32 %v76
  %v79 = vcvt.s32.f32 %v77
  %vm80 = vcmask 130048
  %v82 = vsel %vm80, %v55, 0
  %v85 = vsel %vm80, %v56, 0
  %v88 = vsel %vm80, %v57, 0
  %v91 = vsel %vm80, %v58, 0
  %v94 = vsel %vm80, %v59, 0
  %v97 = vsel %vm80, %v60, 0
  %v100 = vsel %vm80, %v61, 0
  %v103 = vsel %vm80, %v62, 0
  %105 = vmatprep.subr.mxu0 0.0
  %106 = vmatpush1.msra.mxu0 0.0
  %107 = vmatprep.subr.mxu0 0.0
  %108 = vmatpush1.msra.mxu0 0.0
  %109 = vmatprep.subr.mxu0 0.0
  %110 = vmatpush1.msra.mxu0 0.0
  %111 = vmatprep.subr.mxu0 0.0
  %112 = vmatpush1.msra.mxu0 0.0
  %113 = vmatprep.subr.mxu0 0.0
  %114 = vmatpush1.msra.mxu0 0.0
  %115 = vmatprep.subr.mxu0 0.0
  %116 = vmatpush1.msra.mxu0 0.0
  %117 = vmatprep.subr.mxu0 0.0
  %118 = vmatpush1.msra.mxu0 0.0
  %119 = vmatprep.subr.mxu0 0.0
  %120 = vmatpush1.msra.mxu0 0.0
  %121 = vmatprep.subr.mxu0 0.0
  %122 = vmatpush1.msra.mxu0 0.0
  %123 = vmatprep.subr.mxu0 0.0
  %124 = vmatpush1.msra.mxu0 0.0
  %125 = vmatprep.subr.mxu0 0.0
  %126 = vmatpush1.msra.mxu0 0.0
  %127 = vmatprep.subr.mxu0 0.0
  %128 = vmatpush1.msra.mxu0 0.0
  %129 = vmatprep.subr.mxu0 0.0
  %130 = vmatpush1.msra.mxu0 0.0
  %131 = vmatprep.subr.mxu0 0.0
  %132 = vmatpush1.msra.mxu0 0.0
  %133 = vmatprep.subr.mxu0 0.0
  %v134 = vand.u32 %v72, 4294901760
  %135 = vmatpush1.msra.mxu0 %v134
  %136 = vmatprep.subr.mxu0 0.0
  %v137 = vand.u32 %v71, 4294901760
  %138 = vmatpush1.msra.mxu0 %v137
  %139 = vmatprep.subr.mxu0 0.0
  %140 = vmatpush2.msra.mxu0 0.0
  %141 = vmatprep.subr.mxu0 0.0
  %142 = vmatpush2.msra.mxu0 0.0
  %143 = vmatprep.subr.mxu0 0.0
  %144 = vmatpush2.msra.mxu0 0.0
  %145 = vmatprep.subr.mxu0 0.0
  %146 = vmatpush2.msra.mxu0 0.0
  %147 = vmatprep.subr.mxu0 0.0
  %148 = vmatpush2.msra.mxu0 0.0
  %149 = vmatprep.subr.mxu0 0.0
  %150 = vmatpush2.msra.mxu0 0.0
  %151 = vmatprep.subr.mxu0 0.0
  %152 = vmatpush2.msra.mxu0 0.0
  %153 = vmatprep.subr.mxu0 0.0
  %154 = vmatpush2.msra.mxu0 0.0
  %155 = vmatprep.subr.mxu0 0.0
  %156 = vmatpush2.msra.mxu0 0.0
  %157 = vmatprep.subr.mxu0 0.0
  %158 = vmatpush2.msra.mxu0 0.0
  %159 = vmatprep.subr.mxu0 0.0
  %160 = vmatpush2.msra.mxu0 0.0
  %161 = vmatprep.subr.mxu0 0.0
  %162 = vmatpush2.msra.mxu0 0.0
  %163 = vmatprep.subr.mxu0 0.0
  %164 = vmatpush2.msra.mxu0 0.0
  %165 = vmatprep.subr.mxu0 0.0
  %166 = vmatpush2.msra.mxu0 0.0
  %167 = vmatprep.subr.mxu0 0.0
  %168 = vmatpush2.msra.mxu0 0.0
  %169 = vmatprep.subr.mxu0 0.0
  %170 = vmatpush2.msra.mxu0 0.0
  %171 = vmatprep.mubr.f32.mxu0 0.0
  %v172 = vand.u32 %v82, 4294901760
  %v173 = vsub.f32 %v82, %v172
  %v174 = vand.u32 %v173, 4294901760
  %v175 = vsub.f32 %v173, %v174
  %v176 = vand.u32 %v175, 4294901760
  %177 = vmatmul.mubr.f32.gmra.mxu0 %v176
  %v178 = vpop.f32.mrf.mxu0
  %v179 = vadd.f32 0.0, %v178
  %v180 = vpop.f32.mrf.mxu0
  %181 = vmatprep.mubr.f32.mxu0 0.0
  %v182 = vand.u32 %v85, 4294901760
  %v183 = vsub.f32 %v85, %v182
  %v184 = vand.u32 %v183, 4294901760
  %v185 = vsub.f32 %v183, %v184
  %v186 = vand.u32 %v185, 4294901760
  %187 = vmatmul.mubr.f32.gmra.mxu0 %v186
  %v188 = vpop.f32.mrf.mxu0
  %v189 = vadd.f32 0.0, %v188
  %v190 = vpop.f32.mrf.mxu0
  %191 = vmatprep.mubr.f32.mxu0 0.0
  %v192 = vand.u32 %v88, 4294901760
  %v193 = vsub.f32 %v88, %v192
  %v194 = vand.u32 %v193, 4294901760
  %v195 = vsub.f32 %v193, %v194
  %v196 = vand.u32 %v195, 4294901760
  %197 = vmatmul.mubr.f32.gmra.mxu0 %v196
  %v198 = vpop.f32.mrf.mxu0
  %v199 = vadd.f32 0.0, %v198
  %v200 = vpop.f32.mrf.mxu0
  %201 = vmatprep.mubr.f32.mxu0 0.0
  %v202 = vand.u32 %v91, 4294901760
  %v203 = vsub.f32 %v91, %v202
  %v204 = vand.u32 %v203, 4294901760
  %v205 = vsub.f32 %v203, %v204
  %v206 = vand.u32 %v205, 4294901760
  %207 = vmatmul.mubr.f32.gmra.mxu0 %v206
  %v208 = vpop.f32.mrf.mxu0
  %v209 = vadd.f32 0.0, %v208
  %v210 = vpop.f32.mrf.mxu0
  %211 = vmatprep.mubr.f32.mxu0 0.0
  %v212 = vand.u32 %v94, 4294901760
  %v213 = vsub.f32 %v94, %v212
  %v214 = vand.u32 %v213, 4294901760
  %v215 = vsub.f32 %v213, %v214
  %v216 = vand.u32 %v215, 4294901760
  %217 = vmatmul.mubr.f32.gmra.mxu0 %v216
  %v218 = vpop.f32.mrf.mxu0
  %v219 = vadd.f32 0.0, %v218
  %v220 = vpop.f32.mrf.mxu0
  %221 = vmatprep.mubr.f32.mxu0 0.0
  %v222 = vand.u32 %v97, 4294901760
  %v223 = vsub.f32 %v97, %v222
  %v224 = vand.u32 %v223, 4294901760
  %v225 = vsub.f32 %v223, %v224
  %v226 = vand.u32 %v225, 4294901760
  %227 = vmatmul.mubr.f32.gmra.mxu0 %v226
  %v228 = vpop.f32.mrf.mxu0
  %v229 = vadd.f32 0.0, %v228
  %v230 = vpop.f32.mrf.mxu0
  %231 = vmatprep.mubr.f32.mxu0 0.0
  %v232 = vand.u32 %v100, 4294901760
  %v233 = vsub.f32 %v100, %v232
  %v234 = vand.u32 %v233, 4294901760
  %v235 = vsub.f32 %v233, %v234
  %v236 = vand.u32 %v235, 4294901760
  %237 = vmatmul.mubr.f32.gmra.mxu0 %v236
  %v238 = vpop.f32.mrf.mxu0
  %v239 = vadd.f32 0.0, %v238
  %v240 = vpop.f32.mrf.mxu0
  %241 = vmatprep.mubr.f32.mxu0 0.0
  %v242 = vand.u32 %v103, 4294901760
  %v243 = vsub.f32 %v103, %v242
  %v244 = vand.u32 %v243, 4294901760
  %v245 = vsub.f32 %v243, %v244
  %v246 = vand.u32 %v245, 4294901760
  %247 = vmatmul.mubr.f32.gmra.mxu0 %v246
  %v248 = vpop.f32.mrf.mxu0
  %v249 = vadd.f32 0.0, %v248
  %v250 = vpop.f32.mrf.mxu0
  %251 = vdwg.mxu0
  %252 = vmatprep.subr.mxu0 0.0
  %253 = vmatpush1.msra.mxu0 0.0
  %254 = vmatprep.subr.mxu0 0.0
  %255 = vmatpush1.msra.mxu0 0.0
  %256 = vmatprep.subr.mxu0 0.0
  %257 = vmatpush1.msra.mxu0 0.0
  %258 = vmatprep.subr.mxu0 0.0
  %259 = vmatpush1.msra.mxu0 0.0
  %260 = vmatprep.subr.mxu0 0.0
  %261 = vmatpush1.msra.mxu0 0.0
  %262 = vmatprep.subr.mxu0 0.0
  %263 = vmatpush1.msra.mxu0 0.0
  %264 = vmatprep.subr.mxu0 0.0
  %265 = vmatpush1.msra.mxu0 0.0
  %266 = vmatprep.subr.mxu0 0.0
  %267 = vmatpush1.msra.mxu0 0.0
  %268 = vmatprep.subr.mxu0 0.0
  %269 = vmatpush1.msra.mxu0 0.0
  %270 = vmatprep.subr.mxu0 0.0
  %271 = vmatpush1.msra.mxu0 0.0
  %272 = vmatprep.subr.mxu0 0.0
  %273 = vmatpush1.msra.mxu0 0.0
  %274 = vmatprep.subr.mxu0 0.0
  %275 = vmatpush1.msra.mxu0 0.0
  %276 = vmatprep.subr.mxu0 0.0
  %277 = vmatpush1.msra.mxu0 0.0
  %278 = vmatprep.subr.mxu0 0.0
  %279 = vmatpush1.msra.mxu0 0.0
  %280 = vmatprep.subr.mxu0 0.0
  %v281 = vand.u32 %v72, 4294901760
  %v282 = vsub.f32 %v72, %v281
  %v283 = vand.u32 %v282, 4294901760
  %v284 = vsub.f32 %v282, %v283
  %v285 = vand.u32 %v284, 4294901760
  %286 = vmatpush1.msra.mxu0 %v285
  %287 = vmatprep.subr.mxu0 0.0
  %v288 = vand.u32 %v71, 4294901760
  %v289 = vsub.f32 %v71, %v288
  %v290 = vand.u32 %v289, 4294901760
  %v291 = vsub.f32 %v289, %v290
  %v292 = vand.u32 %v291, 4294901760
  %293 = vmatpush1.msra.mxu0 %v292
  %294 = vmatprep.subr.mxu0 0.0
  %295 = vmatpush2.msra.mxu0 0.0
  %296 = vmatprep.subr.mxu0 0.0
  %297 = vmatpush2.msra.mxu0 0.0
  %298 = vmatprep.subr.mxu0 0.0
  %299 = vmatpush2.msra.mxu0 0.0
  %300 = vmatprep.subr.mxu0 0.0
  %301 = vmatpush2.msra.mxu0 0.0
  %302 = vmatprep.subr.mxu0 0.0
  %303 = vmatpush2.msra.mxu0 0.0
  %304 = vmatprep.subr.mxu0 0.0
  %305 = vmatpush2.msra.mxu0 0.0
  %306 = vmatprep.subr.mxu0 0.0
  %307 = vmatpush2.msra.mxu0 0.0
  %308 = vmatprep.subr.mxu0 0.0
  %309 = vmatpush2.msra.mxu0 0.0
  %310 = vmatprep.subr.mxu0 0.0
  %311 = vmatpush2.msra.mxu0 0.0
  %312 = vmatprep.subr.mxu0 0.0
  %313 = vmatpush2.msra.mxu0 0.0
  %314 = vmatprep.subr.mxu0 0.0
  %315 = vmatpush2.msra.mxu0 0.0
  %316 = vmatprep.subr.mxu0 0.0
  %317 = vmatpush2.msra.mxu0 0.0
  %318 = vmatprep.subr.mxu0 0.0
  %319 = vmatpush2.msra.mxu0 0.0
  %320 = vmatprep.subr.mxu0 0.0
  %321 = vmatpush2.msra.mxu0 0.0
  %322 = vmatprep.subr.mxu0 0.0
  %323 = vmatpush2.msra.mxu0 0.0
  %324 = vmatprep.subr.mxu0 0.0
  %325 = vmatpush2.msra.mxu0 0.0
  %326 = vmatprep.mubr.f32.mxu0 0.0
  %v327 = vand.u32 %v82, 4294901760
  %328 = vmatmul.mubr.f32.gmra.mxu0 %v327
  %v329 = vpop.f32.mrf.mxu0
  %v330 = vadd.f32 %v179, %v329
  %v331 = vpop.f32.mrf.mxu0
  %332 = vmatprep.mubr.f32.mxu0 0.0
  %v333 = vand.u32 %v85, 4294901760
  %334 = vmatmul.mubr.f32.gmra.mxu0 %v333
  %v335 = vpop.f32.mrf.mxu0
  %v336 = vadd.f32 %v189, %v335
  %v337 = vpop.f32.mrf.mxu0
  %338 = vmatprep.mubr.f32.mxu0 0.0
  %v339 = vand.u32 %v88, 4294901760
  %340 = vmatmul.mubr.f32.gmra.mxu0 %v339
  %v341 = vpop.f32.mrf.mxu0
  %v342 = vadd.f32 %v199, %v341
  %v343 = vpop.f32.mrf.mxu0
  %344 = vmatprep.mubr.f32.mxu0 0.0
  %v345 = vand.u32 %v91, 4294901760
  %346 = vmatmul.mubr.f32.gmra.mxu0 %v345
  %v347 = vpop.f32.mrf.mxu0
  %v348 = vadd.f32 %v209, %v347
  %v349 = vpop.f32.mrf.mxu0
  %350 = vmatprep.mubr.f32.mxu0 0.0
  %v351 = vand.u32 %v94, 4294901760
  %352 = vmatmul.mubr.f32.gmra.mxu0 %v351
  %v353 = vpop.f32.mrf.mxu0
  %v354 = vadd.f32 %v219, %v353
  %v355 = vpop.f32.mrf.mxu0
  %356 = vmatprep.mubr.f32.mxu0 0.0
  %v357 = vand.u32 %v97, 4294901760
  %358 = vmatmul.mubr.f32.gmra.mxu0 %v357
  %v359 = vpop.f32.mrf.mxu0
  %v360 = vadd.f32 %v229, %v359
  %v361 = vpop.f32.mrf.mxu0
  %362 = vmatprep.mubr.f32.mxu0 0.0
  %v363 = vand.u32 %v100, 4294901760
  %364 = vmatmul.mubr.f32.gmra.mxu0 %v363
  %v365 = vpop.f32.mrf.mxu0
  %v366 = vadd.f32 %v239, %v365
  %v367 = vpop.f32.mrf.mxu0
  %368 = vmatprep.mubr.f32.mxu0 0.0
  %v369 = vand.u32 %v103, 4294901760
  %370 = vmatmul.mubr.f32.gmra.mxu0 %v369
  %v371 = vpop.f32.mrf.mxu0
  %v372 = vadd.f32 %v249, %v371
  %v373 = vpop.f32.mrf.mxu0
  %374 = vdwg.mxu0
  %375 = vmatprep.subr.mxu0 0.0
  %376 = vmatpush1.msra.mxu0 0.0
  %377 = vmatprep.subr.mxu0 0.0
  %378 = vmatpush1.msra.mxu0 0.0
  %379 = vmatprep.subr.mxu0 0.0
  %380 = vmatpush1.msra.mxu0 0.0
  %381 = vmatprep.subr.mxu0 0.0
  %382 = vmatpush1.msra.mxu0 0.0
  %383 = vmatprep.subr.mxu0 0.0
  %384 = vmatpush1.msra.mxu0 0.0
  %385 = vmatprep.subr.mxu0 0.0
  %386 = vmatpush1.msra.mxu0 0.0
  %387 = vmatprep.subr.mxu0 0.0
  %388 = vmatpush1.msra.mxu0 0.0
  %389 = vmatprep.subr.mxu0 0.0
  %390 = vmatpush1.msra.mxu0 0.0
  %391 = vmatprep.subr.mxu0 0.0
  %392 = vmatpush1.msra.mxu0 0.0
  %393 = vmatprep.subr.mxu0 0.0
  %394 = vmatpush1.msra.mxu0 0.0
  %395 = vmatprep.subr.mxu0 0.0
  %396 = vmatpush1.msra.mxu0 0.0
  %397 = vmatprep.subr.mxu0 0.0
  %398 = vmatpush1.msra.mxu0 0.0
  %399 = vmatprep.subr.mxu0 0.0
  %400 = vmatpush1.msra.mxu0 0.0
  %401 = vmatprep.subr.mxu0 0.0
  %402 = vmatpush1.msra.mxu0 0.0
  %403 = vmatprep.subr.mxu0 0.0
  %v404 = vand.u32 %v72, 4294901760
  %v405 = vsub.f32 %v72, %v404
  %406 = vmatpush1.msra.mxu0 %v405
  %407 = vmatprep.subr.mxu0 0.0
  %v408 = vand.u32 %v71, 4294901760
  %v409 = vsub.f32 %v71, %v408
  %410 = vmatpush1.msra.mxu0 %v409
  %411 = vmatprep.subr.mxu0 0.0
  %412 = vmatpush2.msra.mxu0 0.0
  %413 = vmatprep.subr.mxu0 0.0
  %414 = vmatpush2.msra.mxu0 0.0
  %415 = vmatprep.subr.mxu0 0.0
  %416 = vmatpush2.msra.mxu0 0.0
  %417 = vmatprep.subr.mxu0 0.0
  %418 = vmatpush2.msra.mxu0 0.0
  %419 = vmatprep.subr.mxu0 0.0
  %420 = vmatpush2.msra.mxu0 0.0
  %421 = vmatprep.subr.mxu0 0.0
  %422 = vmatpush2.msra.mxu0 0.0
  %423 = vmatprep.subr.mxu0 0.0
  %424 = vmatpush2.msra.mxu0 0.0
  %425 = vmatprep.subr.mxu0 0.0
  %426 = vmatpush2.msra.mxu0 0.0
  %427 = vmatprep.subr.mxu0 0.0
  %428 = vmatpush2.msra.mxu0 0.0
  %429 = vmatprep.subr.mxu0 0.0
  %430 = vmatpush2.msra.mxu0 0.0
  %431 = vmatprep.subr.mxu0 0.0
  %432 = vmatpush2.msra.mxu0 0.0
  %433 = vmatprep.subr.mxu0 0.0
  %434 = vmatpush2.msra.mxu0 0.0
  %435 = vmatprep.subr.mxu0 0.0
  %436 = vmatpush2.msra.mxu0 0.0
  %437 = vmatprep.subr.mxu0 0.0
  %438 = vmatpush2.msra.mxu0 0.0
  %439 = vmatprep.subr.mxu0 0.0
  %440 = vmatpush2.msra.mxu0 0.0
  %441 = vmatprep.subr.mxu0 0.0
  %442 = vmatpush2.msra.mxu0 0.0
  %443 = vmatprep.mubr.f32.mxu0 0.0
  %v444 = vand.u32 %v82, 4294901760
  %v445 = vsub.f32 %v82, %v444
  %446 = vmatmul.mubr.f32.gmra.mxu0 %v445
  %v447 = vpop.f32.mrf.mxu0
  %v448 = vadd.f32 %v330, %v447
  %v449 = vpop.f32.mrf.mxu0
  %450 = vmatprep.mubr.f32.mxu0 0.0
  %v451 = vand.u32 %v85, 4294901760
  %v452 = vsub.f32 %v85, %v451
  %453 = vmatmul.mubr.f32.gmra.mxu0 %v452
  %v454 = vpop.f32.mrf.mxu0
  %v455 = vadd.f32 %v336, %v454
  %v456 = vpop.f32.mrf.mxu0
  %457 = vmatprep.mubr.f32.mxu0 0.0
  %v458 = vand.u32 %v88, 4294901760
  %v459 = vsub.f32 %v88, %v458
  %460 = vmatmul.mubr.f32.gmra.mxu0 %v459
  %v461 = vpop.f32.mrf.mxu0
  %v462 = vadd.f32 %v342, %v461
  %v463 = vpop.f32.mrf.mxu0
  %464 = vmatprep.mubr.f32.mxu0 0.0
  %v465 = vand.u32 %v91, 4294901760
  %v466 = vsub.f32 %v91, %v465
  %467 = vmatmul.mubr.f32.gmra.mxu0 %v466
  %v468 = vpop.f32.mrf.mxu0
  %v469 = vadd.f32 %v348, %v468
  %v470 = vpop.f32.mrf.mxu0
  %471 = vmatprep.mubr.f32.mxu0 0.0
  %v472 = vand.u32 %v94, 4294901760
  %v473 = vsub.f32 %v94, %v472
  %474 = vmatmul.mubr.f32.gmra.mxu0 %v473
  %v475 = vpop.f32.mrf.mxu0
  %v476 = vadd.f32 %v354, %v475
  %v477 = vpop.f32.mrf.mxu0
  %478 = vmatprep.mubr.f32.mxu0 0.0
  %v479 = vand.u32 %v97, 4294901760
  %v480 = vsub.f32 %v97, %v479
  %481 = vmatmul.mubr.f32.gmra.mxu0 %v480
  %v482 = vpop.f32.mrf.mxu0
  %v483 = vadd.f32 %v360, %v482
  %v484 = vpop.f32.mrf.mxu0
  %485 = vmatprep.mubr.f32.mxu0 0.0
  %v486 = vand.u32 %v100, 4294901760
  %v487 = vsub.f32 %v100, %v486
  %488 = vmatmul.mubr.f32.gmra.mxu0 %v487
  %v489 = vpop.f32.mrf.mxu0
  %v490 = vadd.f32 %v366, %v489
  %v491 = vpop.f32.mrf.mxu0
  %492 = vmatprep.mubr.f32.mxu0 0.0
  %v493 = vand.u32 %v103, 4294901760
  %v494 = vsub.f32 %v103, %v493
  %495 = vmatmul.mubr.f32.gmra.mxu0 %v494
  %v496 = vpop.f32.mrf.mxu0
  %v497 = vadd.f32 %v372, %v496
  %v498 = vpop.f32.mrf.mxu0
  %499 = vdwg.mxu0
  %500 = vmatprep.subr.mxu0 0.0
  %501 = vmatpush1.msra.mxu0 0.0
  %502 = vmatprep.subr.mxu0 0.0
  %503 = vmatpush1.msra.mxu0 0.0
  %504 = vmatprep.subr.mxu0 0.0
  %505 = vmatpush1.msra.mxu0 0.0
  %506 = vmatprep.subr.mxu0 0.0
  %507 = vmatpush1.msra.mxu0 0.0
  %508 = vmatprep.subr.mxu0 0.0
  %509 = vmatpush1.msra.mxu0 0.0
  %510 = vmatprep.subr.mxu0 0.0
  %511 = vmatpush1.msra.mxu0 0.0
  %512 = vmatprep.subr.mxu0 0.0
  %513 = vmatpush1.msra.mxu0 0.0
  %514 = vmatprep.subr.mxu0 0.0
  %515 = vmatpush1.msra.mxu0 0.0
  %516 = vmatprep.subr.mxu0 0.0
  %517 = vmatpush1.msra.mxu0 0.0
  %518 = vmatprep.subr.mxu0 0.0
  %519 = vmatpush1.msra.mxu0 0.0
  %520 = vmatprep.subr.mxu0 0.0
  %521 = vmatpush1.msra.mxu0 0.0
  %522 = vmatprep.subr.mxu0 0.0
  %523 = vmatpush1.msra.mxu0 0.0
  %524 = vmatprep.subr.mxu0 0.0
  %525 = vmatpush1.msra.mxu0 0.0
  %526 = vmatprep.subr.mxu0 0.0
  %527 = vmatpush1.msra.mxu0 0.0
  %528 = vmatprep.subr.mxu0 0.0
  %v529 = vand.u32 %v72, 4294901760
  %530 = vmatpush1.msra.mxu0 %v529
  %531 = vmatprep.subr.mxu0 0.0
  %v532 = vand.u32 %v71, 4294901760
  %533 = vmatpush1.msra.mxu0 %v532
  %534 = vmatprep.subr.mxu0 0.0
  %535 = vmatpush2.msra.mxu0 0.0
  %536 = vmatprep.subr.mxu0 0.0
  %537 = vmatpush2.msra.mxu0 0.0
  %538 = vmatprep.subr.mxu0 0.0
  %539 = vmatpush2.msra.mxu0 0.0
  %540 = vmatprep.subr.mxu0 0.0
  %541 = vmatpush2.msra.mxu0 0.0
  %542 = vmatprep.subr.mxu0 0.0
  %543 = vmatpush2.msra.mxu0 0.0
  %544 = vmatprep.subr.mxu0 0.0
  %545 = vmatpush2.msra.mxu0 0.0
  %546 = vmatprep.subr.mxu0 0.0
  %547 = vmatpush2.msra.mxu0 0.0
  %548 = vmatprep.subr.mxu0 0.0
  %549 = vmatpush2.msra.mxu0 0.0
  %550 = vmatprep.subr.mxu0 0.0
  %551 = vmatpush2.msra.mxu0 0.0
  %552 = vmatprep.subr.mxu0 0.0
  %553 = vmatpush2.msra.mxu0 0.0
  %554 = vmatprep.subr.mxu0 0.0
  %555 = vmatpush2.msra.mxu0 0.0
  %556 = vmatprep.subr.mxu0 0.0
  %557 = vmatpush2.msra.mxu0 0.0
  %558 = vmatprep.subr.mxu0 0.0
  %559 = vmatpush2.msra.mxu0 0.0
  %560 = vmatprep.subr.mxu0 0.0
  %561 = vmatpush2.msra.mxu0 0.0
  %562 = vmatprep.subr.mxu0 0.0
  %563 = vmatpush2.msra.mxu0 0.0
  %564 = vmatprep.subr.mxu0 0.0
  %565 = vmatpush2.msra.mxu0 0.0
  %566 = vmatprep.mubr.f32.mxu0 0.0
  %v567 = vand.u32 %v82, 4294901760
  %v568 = vsub.f32 %v82, %v567
  %v569 = vand.u32 %v568, 4294901760
  %570 = vmatmul.mubr.f32.gmra.mxu0 %v569
  %v571 = vpop.f32.mrf.mxu0
  %v572 = vadd.f32 %v448, %v571
  %v573 = vpop.f32.mrf.mxu0
  %574 = vmatprep.mubr.f32.mxu0 0.0
  %v575 = vand.u32 %v85, 4294901760
  %v576 = vsub.f32 %v85, %v575
  %v577 = vand.u32 %v576, 4294901760
  %578 = vmatmul.mubr.f32.gmra.mxu0 %v577
  %v579 = vpop.f32.mrf.mxu0
  %v580 = vadd.f32 %v455, %v579
  %v581 = vpop.f32.mrf.mxu0
  %582 = vmatprep.mubr.f32.mxu0 0.0
  %v583 = vand.u32 %v88, 4294901760
  %v584 = vsub.f32 %v88, %v583
  %v585 = vand.u32 %v584, 4294901760
  %586 = vmatmul.mubr.f32.gmra.mxu0 %v585
  %v587 = vpop.f32.mrf.mxu0
  %v588 = vadd.f32 %v462, %v587
  %v589 = vpop.f32.mrf.mxu0
  %590 = vmatprep.mubr.f32.mxu0 0.0
  %v591 = vand.u32 %v91, 4294901760
  %v592 = vsub.f32 %v91, %v591
  %v593 = vand.u32 %v592, 4294901760
  %594 = vmatmul.mubr.f32.gmra.mxu0 %v593
  %v595 = vpop.f32.mrf.mxu0
  %v596 = vadd.f32 %v469, %v595
  %v597 = vpop.f32.mrf.mxu0
  %598 = vmatprep.mubr.f32.mxu0 0.0
  %v599 = vand.u32 %v94, 4294901760
  %v600 = vsub.f32 %v94, %v599
  %v601 = vand.u32 %v600, 4294901760
  %602 = vmatmul.mubr.f32.gmra.mxu0 %v601
  %v603 = vpop.f32.mrf.mxu0
  %v604 = vadd.f32 %v476, %v603
  %v605 = vpop.f32.mrf.mxu0
  %606 = vmatprep.mubr.f32.mxu0 0.0
  %v607 = vand.u32 %v97, 4294901760
  %v608 = vsub.f32 %v97, %v607
  %v609 = vand.u32 %v608, 4294901760
  %610 = vmatmul.mubr.f32.gmra.mxu0 %v609
  %v611 = vpop.f32.mrf.mxu0
  %v612 = vadd.f32 %v483, %v611
  %v613 = vpop.f32.mrf.mxu0
  %614 = vmatprep.mubr.f32.mxu0 0.0
  %v615 = vand.u32 %v100, 4294901760
  %v616 = vsub.f32 %v100, %v615
  %v617 = vand.u32 %v616, 4294901760
  %618 = vmatmul.mubr.f32.gmra.mxu0 %v617
  %v619 = vpop.f32.mrf.mxu0
  %v620 = vadd.f32 %v490, %v619
  %v621 = vpop.f32.mrf.mxu0
  %622 = vmatprep.mubr.f32.mxu0 0.0
  %v623 = vand.u32 %v103, 4294901760
  %v624 = vsub.f32 %v103, %v623
  %v625 = vand.u32 %v624, 4294901760
  %626 = vmatmul.mubr.f32.gmra.mxu0 %v625
  %v627 = vpop.f32.mrf.mxu0
  %v628 = vadd.f32 %v497, %v627
  %v629 = vpop.f32.mrf.mxu0
  %630 = vdwg.mxu0
  %631 = vmatprep.subr.mxu0 0.0
  %632 = vmatpush1.msra.mxu0 0.0
  %633 = vmatprep.subr.mxu0 0.0
  %634 = vmatpush1.msra.mxu0 0.0
  %635 = vmatprep.subr.mxu0 0.0
  %636 = vmatpush1.msra.mxu0 0.0
  %637 = vmatprep.subr.mxu0 0.0
  %638 = vmatpush1.msra.mxu0 0.0
  %639 = vmatprep.subr.mxu0 0.0
  %640 = vmatpush1.msra.mxu0 0.0
  %641 = vmatprep.subr.mxu0 0.0
  %642 = vmatpush1.msra.mxu0 0.0
  %643 = vmatprep.subr.mxu0 0.0
  %644 = vmatpush1.msra.mxu0 0.0
  %645 = vmatprep.subr.mxu0 0.0
  %646 = vmatpush1.msra.mxu0 0.0
  %647 = vmatprep.subr.mxu0 0.0
  %648 = vmatpush1.msra.mxu0 0.0
  %649 = vmatprep.subr.mxu0 0.0
  %650 = vmatpush1.msra.mxu0 0.0
  %651 = vmatprep.subr.mxu0 0.0
  %652 = vmatpush1.msra.mxu0 0.0
  %653 = vmatprep.subr.mxu0 0.0
  %654 = vmatpush1.msra.mxu0 0.0
  %655 = vmatprep.subr.mxu0 0.0
  %656 = vmatpush1.msra.mxu0 0.0
  %657 = vmatprep.subr.mxu0 0.0
  %658 = vmatpush1.msra.mxu0 0.0
  %659 = vmatprep.subr.mxu0 0.0
  %v660 = vand.u32 %v72, 4294901760
  %v661 = vsub.f32 %v72, %v660
  %v662 = vand.u32 %v661, 4294901760
  %663 = vmatpush1.msra.mxu0 %v662
  %664 = vmatprep.subr.mxu0 0.0
  %v665 = vand.u32 %v71, 4294901760
  %v666 = vsub.f32 %v71, %v665
  %v667 = vand.u32 %v666, 4294901760
  %668 = vmatpush1.msra.mxu0 %v667
  %669 = vmatprep.subr.mxu0 0.0
  %670 = vmatpush2.msra.mxu0 0.0
  %671 = vmatprep.subr.mxu0 0.0
  %672 = vmatpush2.msra.mxu0 0.0
  %673 = vmatprep.subr.mxu0 0.0
  %674 = vmatpush2.msra.mxu0 0.0
  %675 = vmatprep.subr.mxu0 0.0
  %676 = vmatpush2.msra.mxu0 0.0
  %677 = vmatprep.subr.mxu0 0.0
  %678 = vmatpush2.msra.mxu0 0.0
  %679 = vmatprep.subr.mxu0 0.0
  %680 = vmatpush2.msra.mxu0 0.0
  %681 = vmatprep.subr.mxu0 0.0
  %682 = vmatpush2.msra.mxu0 0.0
  %683 = vmatprep.subr.mxu0 0.0
  %684 = vmatpush2.msra.mxu0 0.0
  %685 = vmatprep.subr.mxu0 0.0
  %686 = vmatpush2.msra.mxu0 0.0
  %687 = vmatprep.subr.mxu0 0.0
  %688 = vmatpush2.msra.mxu0 0.0
  %689 = vmatprep.subr.mxu0 0.0
  %690 = vmatpush2.msra.mxu0 0.0
  %691 = vmatprep.subr.mxu0 0.0
  %692 = vmatpush2.msra.mxu0 0.0
  %693 = vmatprep.subr.mxu0 0.0
  %694 = vmatpush2.msra.mxu0 0.0
  %695 = vmatprep.subr.mxu0 0.0
  %696 = vmatpush2.msra.mxu0 0.0
  %697 = vmatprep.subr.mxu0 0.0
  %698 = vmatpush2.msra.mxu0 0.0
  %699 = vmatprep.subr.mxu0 0.0
  %700 = vmatpush2.msra.mxu0 0.0
  %701 = vmatprep.mubr.f32.mxu0 0.0
  %v702 = vand.u32 %v82, 4294901760
  %703 = vmatmul.mubr.f32.gmra.mxu0 %v702
  %v704 = vpop.f32.mrf.mxu0
  %v705 = vadd.f32 %v572, %v704
  %v706 = vpop.f32.mrf.mxu0
  %707 = vmatprep.mubr.f32.mxu0 0.0
  %v708 = vand.u32 %v85, 4294901760
  %709 = vmatmul.mubr.f32.gmra.mxu0 %v708
  %v710 = vpop.f32.mrf.mxu0
  %v711 = vadd.f32 %v580, %v710
  %v712 = vpop.f32.mrf.mxu0
  %713 = vmatprep.mubr.f32.mxu0 0.0
  %v714 = vand.u32 %v88, 4294901760
  %715 = vmatmul.mubr.f32.gmra.mxu0 %v714
  %v716 = vpop.f32.mrf.mxu0
  %v717 = vadd.f32 %v588, %v716
  %v718 = vpop.f32.mrf.mxu0
  %719 = vmatprep.mubr.f32.mxu0 0.0
  %v720 = vand.u32 %v91, 4294901760
  %721 = vmatmul.mubr.f32.gmra.mxu0 %v720
  %v722 = vpop.f32.mrf.mxu0
  %v723 = vadd.f32 %v596, %v722
  %v724 = vpop.f32.mrf.mxu0
  %725 = vmatprep.mubr.f32.mxu0 0.0
  %v726 = vand.u32 %v94, 4294901760
  %727 = vmatmul.mubr.f32.gmra.mxu0 %v726
  %v728 = vpop.f32.mrf.mxu0
  %v729 = vadd.f32 %v604, %v728
  %v730 = vpop.f32.mrf.mxu0
  %731 = vmatprep.mubr.f32.mxu0 0.0
  %v732 = vand.u32 %v97, 4294901760
  %733 = vmatmul.mubr.f32.gmra.mxu0 %v732
  %v734 = vpop.f32.mrf.mxu0
  %v735 = vadd.f32 %v612, %v734
  %v736 = vpop.f32.mrf.mxu0
  %737 = vmatprep.mubr.f32.mxu0 0.0
  %v738 = vand.u32 %v100, 4294901760
  %739 = vmatmul.mubr.f32.gmra.mxu0 %v738
  %v740 = vpop.f32.mrf.mxu0
  %v741 = vadd.f32 %v620, %v740
  %v742 = vpop.f32.mrf.mxu0
  %743 = vmatprep.mubr.f32.mxu0 0.0
  %v744 = vand.u32 %v103, 4294901760
  %745 = vmatmul.mubr.f32.gmra.mxu0 %v744
  %v746 = vpop.f32.mrf.mxu0
  %v747 = vadd.f32 %v628, %v746
  %v748 = vpop.f32.mrf.mxu0
  %749 = vdwg.mxu0
  %750 = vmatprep.subr.mxu0 0.0
  %751 = vmatpush1.msra.mxu0 0.0
  %752 = vmatprep.subr.mxu0 0.0
  %753 = vmatpush1.msra.mxu0 0.0
  %754 = vmatprep.subr.mxu0 0.0
  %755 = vmatpush1.msra.mxu0 0.0
  %756 = vmatprep.subr.mxu0 0.0
  %757 = vmatpush1.msra.mxu0 0.0
  %758 = vmatprep.subr.mxu0 0.0
  %759 = vmatpush1.msra.mxu0 0.0
  %760 = vmatprep.subr.mxu0 0.0
  %761 = vmatpush1.msra.mxu0 0.0
  %762 = vmatprep.subr.mxu0 0.0
  %763 = vmatpush1.msra.mxu0 0.0
  %764 = vmatprep.subr.mxu0 0.0
  %765 = vmatpush1.msra.mxu0 0.0
  %766 = vmatprep.subr.mxu0 0.0
  %767 = vmatpush1.msra.mxu0 0.0
  %768 = vmatprep.subr.mxu0 0.0
  %769 = vmatpush1.msra.mxu0 0.0
  %770 = vmatprep.subr.mxu0 0.0
  %771 = vmatpush1.msra.mxu0 0.0
  %772 = vmatprep.subr.mxu0 0.0
  %773 = vmatpush1.msra.mxu0 0.0
  %774 = vmatprep.subr.mxu0 0.0
  %775 = vmatpush1.msra.mxu0 0.0
  %776 = vmatprep.subr.mxu0 0.0
  %777 = vmatpush1.msra.mxu0 0.0
  %778 = vmatprep.subr.mxu0 0.0
  %v779 = vand.u32 %v72, 4294901760
  %780 = vmatpush1.msra.mxu0 %v779
  %781 = vmatprep.subr.mxu0 0.0
  %v782 = vand.u32 %v71, 4294901760
  %783 = vmatpush1.msra.mxu0 %v782
  %784 = vmatprep.subr.mxu0 0.0
  %785 = vmatpush2.msra.mxu0 0.0
  %786 = vmatprep.subr.mxu0 0.0
  %787 = vmatpush2.msra.mxu0 0.0
  %788 = vmatprep.subr.mxu0 0.0
  %789 = vmatpush2.msra.mxu0 0.0
  %790 = vmatprep.subr.mxu0 0.0
  %791 = vmatpush2.msra.mxu0 0.0
  %792 = vmatprep.subr.mxu0 0.0
  %793 = vmatpush2.msra.mxu0 0.0
  %794 = vmatprep.subr.mxu0 0.0
  %795 = vmatpush2.msra.mxu0 0.0
  %796 = vmatprep.subr.mxu0 0.0
  %797 = vmatpush2.msra.mxu0 0.0
  %798 = vmatprep.subr.mxu0 0.0
  %799 = vmatpush2.msra.mxu0 0.0
  %800 = vmatprep.subr.mxu0 0.0
  %801 = vmatpush2.msra.mxu0 0.0
  %802 = vmatprep.subr.mxu0 0.0
  %803 = vmatpush2.msra.mxu0 0.0
  %804 = vmatprep.subr.mxu0 0.0
  %805 = vmatpush2.msra.mxu0 0.0
  %806 = vmatprep.subr.mxu0 0.0
  %807 = vmatpush2.msra.mxu0 0.0
  %808 = vmatprep.subr.mxu0 0.0
  %809 = vmatpush2.msra.mxu0 0.0
  %810 = vmatprep.subr.mxu0 0.0
  %811 = vmatpush2.msra.mxu0 0.0
  %812 = vmatprep.subr.mxu0 0.0
  %813 = vmatpush2.msra.mxu0 0.0
  %814 = vmatprep.subr.mxu0 0.0
  %815 = vmatpush2.msra.mxu0 0.0
  %816 = vmatprep.mubr.f32.mxu0 0.0
  %v817 = vand.u32 %v82, 4294901760
  %818 = vmatmul.mubr.f32.gmra.mxu0 %v817
  %v819 = vpop.f32.mrf.mxu0
  %v820 = vadd.f32 %v705, %v819
  %v821 = vpop.f32.mrf.mxu0
  %822 = vmatprep.mubr.f32.mxu0 0.0
  %v823 = vand.u32 %v85, 4294901760
  %824 = vmatmul.mubr.f32.gmra.mxu0 %v823
  %v825 = vpop.f32.mrf.mxu0
  %v826 = vadd.f32 %v711, %v825
  %v827 = vpop.f32.mrf.mxu0
  %828 = vmatprep.mubr.f32.mxu0 0.0
  %v829 = vand.u32 %v88, 4294901760
  %830 = vmatmul.mubr.f32.gmra.mxu0 %v829
  %v831 = vpop.f32.mrf.mxu0
  %v832 = vadd.f32 %v717, %v831
  %v833 = vpop.f32.mrf.mxu0
  %834 = vmatprep.mubr.f32.mxu0 0.0
  %v835 = vand.u32 %v91, 4294901760
  %836 = vmatmul.mubr.f32.gmra.mxu0 %v835
  %v837 = vpop.f32.mrf.mxu0
  %v838 = vadd.f32 %v723, %v837
  %v839 = vpop.f32.mrf.mxu0
  %840 = vmatprep.mubr.f32.mxu0 0.0
  %v841 = vand.u32 %v94, 4294901760
  %842 = vmatmul.mubr.f32.gmra.mxu0 %v841
  %v843 = vpop.f32.mrf.mxu0
  %v844 = vadd.f32 %v729, %v843
  %v845 = vpop.f32.mrf.mxu0
  %846 = vmatprep.mubr.f32.mxu0 0.0
  %v847 = vand.u32 %v97, 4294901760
  %848 = vmatmul.mubr.f32.gmra.mxu0 %v847
  %v849 = vpop.f32.mrf.mxu0
  %v850 = vadd.f32 %v735, %v849
  %v851 = vpop.f32.mrf.mxu0
  %852 = vmatprep.mubr.f32.mxu0 0.0
  %v853 = vand.u32 %v100, 4294901760
  %854 = vmatmul.mubr.f32.gmra.mxu0 %v853
  %v855 = vpop.f32.mrf.mxu0
  %v856 = vadd.f32 %v741, %v855
  %v857 = vpop.f32.mrf.mxu0
  %858 = vmatprep.mubr.f32.mxu0 0.0
  %v859 = vand.u32 %v103, 4294901760
  %860 = vmatmul.mubr.f32.gmra.mxu0 %v859
  %v861 = vpop.f32.mrf.mxu0
  %v862 = vadd.f32 %v747, %v861
  %v863 = vpop.f32.mrf.mxu0
  %864 = vdwg.mxu0
  %865 = vmatprep.subr.mxu0 0.0
  %866 = vmatpush1.msra.mxu0 0.0
  %867 = vmatprep.subr.mxu0 0.0
  %868 = vmatpush1.msra.mxu0 0.0
  %869 = vmatprep.subr.mxu0 0.0
  %870 = vmatpush1.msra.mxu0 0.0
  %871 = vmatprep.subr.mxu0 0.0
  %872 = vmatpush1.msra.mxu0 0.0
  %873 = vmatprep.subr.mxu0 0.0
  %874 = vmatpush1.msra.mxu0 0.0
  %875 = vmatprep.subr.mxu0 0.0
  %876 = vmatpush1.msra.mxu0 0.0
  %877 = vmatprep.subr.mxu0 0.0
  %878 = vmatpush1.msra.mxu0 0.0
  %879 = vmatprep.subr.mxu0 0.0
  %880 = vmatpush1.msra.mxu0 0.0
  %881 = vmatprep.subr.mxu0 0.0
  %882 = vmatpush1.msra.mxu0 0.0
  %883 = vmatprep.subr.mxu0 0.0
  %884 = vmatpush1.msra.mxu0 0.0
  %885 = vmatprep.subr.mxu0 0.0
  %886 = vmatpush1.msra.mxu0 0.0
  %887 = vmatprep.subr.mxu0 0.0
  %888 = vmatpush1.msra.mxu0 0.0
  %889 = vmatprep.subr.mxu0 0.0
  %890 = vmatpush1.msra.mxu0 0.0
  %891 = vmatprep.subr.mxu0 0.0
  %892 = vmatpush1.msra.mxu0 0.0
  %893 = vmatprep.subr.mxu0 0.0
  %v894 = vand.u32 %v79, 4294901760
  %895 = vmatpush1.msra.mxu0 %v894
  %896 = vmatprep.subr.mxu0 0.0
  %v897 = vand.u32 %v78, 4294901760
  %898 = vmatpush1.msra.mxu0 %v897
  %899 = vmatprep.subr.mxu0 0.0
  %900 = vmatpush2.msra.mxu0 0.0
  %901 = vmatprep.subr.mxu0 0.0
  %902 = vmatpush2.msra.mxu0 0.0
  %903 = vmatprep.subr.mxu0 0.0
  %904 = vmatpush2.msra.mxu0 0.0
  %905 = vmatprep.subr.mxu0 0.0
  %906 = vmatpush2.msra.mxu0 0.0
  %907 = vmatprep.subr.mxu0 0.0
  %908 = vmatpush2.msra.mxu0 0.0
  %909 = vmatprep.subr.mxu0 0.0
  %910 = vmatpush2.msra.mxu0 0.0
  %911 = vmatprep.subr.mxu0 0.0
  %912 = vmatpush2.msra.mxu0 0.0
  %913 = vmatprep.subr.mxu0 0.0
  %914 = vmatpush2.msra.mxu0 0.0
  %915 = vmatprep.subr.mxu0 0.0
  %916 = vmatpush2.msra.mxu0 0.0
  %917 = vmatprep.subr.mxu0 0.0
  %918 = vmatpush2.msra.mxu0 0.0
  %919 = vmatprep.subr.mxu0 0.0
  %920 = vmatpush2.msra.mxu0 0.0
  %921 = vmatprep.subr.mxu0 0.0
  %922 = vmatpush2.msra.mxu0 0.0
  %923 = vmatprep.subr.mxu0 0.0
  %924 = vmatpush2.msra.mxu0 0.0
  %925 = vmatprep.subr.mxu0 0.0
  %926 = vmatpush2.msra.mxu0 0.0
  %927 = vmatprep.subr.mxu0 0.0
  %928 = vmatpush2.msra.mxu0 0.0
  %929 = vmatprep.subr.mxu0 0.0
  %930 = vmatpush2.msra.mxu0 0.0
  %931 = vmatprep.mubr.f32.mxu0 0.0
  %v932 = vand.u32 %v82, 4294901760
  %v933 = vsub.f32 %v82, %v932
  %v934 = vand.u32 %v933, 4294901760
  %v935 = vsub.f32 %v933, %v934
  %v936 = vand.u32 %v935, 4294901760
  %937 = vmatmul.mubr.f32.gmra.mxu0 %v936
  %v938 = vpop.f32.mrf.mxu0
  %v939 = vadd.f32 0.0, %v938
  %v940 = vpop.f32.mrf.mxu0
  %941 = vmatprep.mubr.f32.mxu0 0.0
  %v942 = vand.u32 %v85, 4294901760
  %v943 = vsub.f32 %v85, %v942
  %v944 = vand.u32 %v943, 4294901760
  %v945 = vsub.f32 %v943, %v944
  %v946 = vand.u32 %v945, 4294901760
  %947 = vmatmul.mubr.f32.gmra.mxu0 %v946
  %v948 = vpop.f32.mrf.mxu0
  %v949 = vadd.f32 0.0, %v948
  %v950 = vpop.f32.mrf.mxu0
  %951 = vmatprep.mubr.f32.mxu0 0.0
  %v952 = vand.u32 %v88, 4294901760
  %v953 = vsub.f32 %v88, %v952
  %v954 = vand.u32 %v953, 4294901760
  %v955 = vsub.f32 %v953, %v954
  %v956 = vand.u32 %v955, 4294901760
  %957 = vmatmul.mubr.f32.gmra.mxu0 %v956
  %v958 = vpop.f32.mrf.mxu0
  %v959 = vadd.f32 0.0, %v958
  %v960 = vpop.f32.mrf.mxu0
  %961 = vmatprep.mubr.f32.mxu0 0.0
  %v962 = vand.u32 %v91, 4294901760
  %v963 = vsub.f32 %v91, %v962
  %v964 = vand.u32 %v963, 4294901760
  %v965 = vsub.f32 %v963, %v964
  %v966 = vand.u32 %v965, 4294901760
  %967 = vmatmul.mubr.f32.gmra.mxu0 %v966
  %v968 = vpop.f32.mrf.mxu0
  %v969 = vadd.f32 0.0, %v968
  %v970 = vpop.f32.mrf.mxu0
  %971 = vmatprep.mubr.f32.mxu0 0.0
  %v972 = vand.u32 %v94, 4294901760
  %v973 = vsub.f32 %v94, %v972
  %v974 = vand.u32 %v973, 4294901760
  %v975 = vsub.f32 %v973, %v974
  %v976 = vand.u32 %v975, 4294901760
  %977 = vmatmul.mubr.f32.gmra.mxu0 %v976
  %v978 = vpop.f32.mrf.mxu0
  %v979 = vadd.f32 0.0, %v978
  %v980 = vpop.f32.mrf.mxu0
  %981 = vmatprep.mubr.f32.mxu0 0.0
  %v982 = vand.u32 %v97, 4294901760
  %v983 = vsub.f32 %v97, %v982
  %v984 = vand.u32 %v983, 4294901760
  %v985 = vsub.f32 %v983, %v984
  %v986 = vand.u32 %v985, 4294901760
  %987 = vmatmul.mubr.f32.gmra.mxu0 %v986
  %v988 = vpop.f32.mrf.mxu0
  %v989 = vadd.f32 0.0, %v988
  %v990 = vpop.f32.mrf.mxu0
  %991 = vmatprep.mubr.f32.mxu0 0.0
  %v992 = vand.u32 %v100, 4294901760
  %v993 = vsub.f32 %v100, %v992
  %v994 = vand.u32 %v993, 4294901760
  %v995 = vsub.f32 %v993, %v994
  %v996 = vand.u32 %v995, 4294901760
  %997 = vmatmul.mubr.f32.gmra.mxu0 %v996
  %v998 = vpop.f32.mrf.mxu0
  %v999 = vadd.f32 0.0, %v998
  %v1000 = vpop.f32.mrf.mxu0
  %1001 = vmatprep.mubr.f32.mxu0 0.0
  %v1002 = vand.u32 %v103, 4294901760
  %v1003 = vsub.f32 %v103, %v1002
  %v1004 = vand.u32 %v1003, 4294901760
  %v1005 = vsub.f32 %v1003, %v1004
  %v1006 = vand.u32 %v1005, 4294901760
  %1007 = vmatmul.mubr.f32.gmra.mxu0 %v1006
  %v1008 = vpop.f32.mrf.mxu0
  %v1009 = vadd.f32 0.0, %v1008
  %v1010 = vpop.f32.mrf.mxu0
  %1011 = vdwg.mxu0
  %1012 = vmatprep.subr.mxu0 0.0
  %1013 = vmatpush1.msra.mxu0 0.0
  %1014 = vmatprep.subr.mxu0 0.0
  %1015 = vmatpush1.msra.mxu0 0.0
  %1016 = vmatprep.subr.mxu0 0.0
  %1017 = vmatpush1.msra.mxu0 0.0
  %1018 = vmatprep.subr.mxu0 0.0
  %1019 = vmatpush1.msra.mxu0 0.0
  %1020 = vmatprep.subr.mxu0 0.0
  %1021 = vmatpush1.msra.mxu0 0.0
  %1022 = vmatprep.subr.mxu0 0.0
  %1023 = vmatpush1.msra.mxu0 0.0
  %1024 = vmatprep.subr.mxu0 0.0
  %1025 = vmatpush1.msra.mxu0 0.0
  %1026 = vmatprep.subr.mxu0 0.0
  %1027 = vmatpush1.msra.mxu0 0.0
  %1028 = vmatprep.subr.mxu0 0.0
  %1029 = vmatpush1.msra.mxu0 0.0
  %1030 = vmatprep.subr.mxu0 0.0
  %1031 = vmatpush1.msra.mxu0 0.0
  %1032 = vmatprep.subr.mxu0 0.0
  %1033 = vmatpush1.msra.mxu0 0.0
  %1034 = vmatprep.subr.mxu0 0.0
  %1035 = vmatpush1.msra.mxu0 0.0
  %1036 = vmatprep.subr.mxu0 0.0
  %1037 = vmatpush1.msra.mxu0 0.0
  %1038 = vmatprep.subr.mxu0 0.0
  %1039 = vmatpush1.msra.mxu0 0.0
  %1040 = vmatprep.subr.mxu0 0.0
  %v1041 = vand.u32 %v79, 4294901760
  %v1042 = vsub.f32 %v79, %v1041
  %v1043 = vand.u32 %v1042, 4294901760
  %v1044 = vsub.f32 %v1042, %v1043
  %v1045 = vand.u32 %v1044, 4294901760
  %1046 = vmatpush1.msra.mxu0 %v1045
  %1047 = vmatprep.subr.mxu0 0.0
  %v1048 = vand.u32 %v78, 4294901760
  %v1049 = vsub.f32 %v78, %v1048
  %v1050 = vand.u32 %v1049, 4294901760
  %v1051 = vsub.f32 %v1049, %v1050
  %v1052 = vand.u32 %v1051, 4294901760
  %1053 = vmatpush1.msra.mxu0 %v1052
  %1054 = vmatprep.subr.mxu0 0.0
  %1055 = vmatpush2.msra.mxu0 0.0
  %1056 = vmatprep.subr.mxu0 0.0
  %1057 = vmatpush2.msra.mxu0 0.0
  %1058 = vmatprep.subr.mxu0 0.0
  %1059 = vmatpush2.msra.mxu0 0.0
  %1060 = vmatprep.subr.mxu0 0.0
  %1061 = vmatpush2.msra.mxu0 0.0
  %1062 = vmatprep.subr.mxu0 0.0
  %1063 = vmatpush2.msra.mxu0 0.0
  %1064 = vmatprep.subr.mxu0 0.0
  %1065 = vmatpush2.msra.mxu0 0.0
  %1066 = vmatprep.subr.mxu0 0.0
  %1067 = vmatpush2.msra.mxu0 0.0
  %1068 = vmatprep.subr.mxu0 0.0
  %1069 = vmatpush2.msra.mxu0 0.0
  %1070 = vmatprep.subr.mxu0 0.0
  %1071 = vmatpush2.msra.mxu0 0.0
  %1072 = vmatprep.subr.mxu0 0.0
  %1073 = vmatpush2.msra.mxu0 0.0
  %1074 = vmatprep.subr.mxu0 0.0
  %1075 = vmatpush2.msra.mxu0 0.0
  %1076 = vmatprep.subr.mxu0 0.0
  %1077 = vmatpush2.msra.mxu0 0.0
  %1078 = vmatprep.subr.mxu0 0.0
  %1079 = vmatpush2.msra.mxu0 0.0
  %1080 = vmatprep.subr.mxu0 0.0
  %1081 = vmatpush2.msra.mxu0 0.0
  %1082 = vmatprep.subr.mxu0 0.0
  %1083 = vmatpush2.msra.mxu0 0.0
  %1084 = vmatprep.subr.mxu0 0.0
  %1085 = vmatpush2.msra.mxu0 0.0
  %1086 = vmatprep.mubr.f32.mxu0 0.0
  %v1087 = vand.u32 %v82, 4294901760
  %1088 = vmatmul.mubr.f32.gmra.mxu0 %v1087
  %v1089 = vpop.f32.mrf.mxu0
  %v1090 = vadd.f32 %v939, %v1089
  %v1091 = vpop.f32.mrf.mxu0
  %1092 = vmatprep.mubr.f32.mxu0 0.0
  %v1093 = vand.u32 %v85, 4294901760
  %1094 = vmatmul.mubr.f32.gmra.mxu0 %v1093
  %v1095 = vpop.f32.mrf.mxu0
  %v1096 = vadd.f32 %v949, %v1095
  %v1097 = vpop.f32.mrf.mxu0
  %1098 = vmatprep.mubr.f32.mxu0 0.0
  %v1099 = vand.u32 %v88, 4294901760
  %1100 = vmatmul.mubr.f32.gmra.mxu0 %v1099
  %v1101 = vpop.f32.mrf.mxu0
  %v1102 = vadd.f32 %v959, %v1101
  %v1103 = vpop.f32.mrf.mxu0
  %1104 = vmatprep.mubr.f32.mxu0 0.0
  %v1105 = vand.u32 %v91, 4294901760
  %1106 = vmatmul.mubr.f32.gmra.mxu0 %v1105
  %v1107 = vpop.f32.mrf.mxu0
  %v1108 = vadd.f32 %v969, %v1107
  %v1109 = vpop.f32.mrf.mxu0
  %1110 = vmatprep.mubr.f32.mxu0 0.0
  %v1111 = vand.u32 %v94, 4294901760
  %1112 = vmatmul.mubr.f32.gmra.mxu0 %v1111
  %v1113 = vpop.f32.mrf.mxu0
  %v1114 = vadd.f32 %v979, %v1113
  %v1115 = vpop.f32.mrf.mxu0
  %1116 = vmatprep.mubr.f32.mxu0 0.0
  %v1117 = vand.u32 %v97, 4294901760
  %1118 = vmatmul.mubr.f32.gmra.mxu0 %v1117
  %v1119 = vpop.f32.mrf.mxu0
  %v1120 = vadd.f32 %v989, %v1119
  %v1121 = vpop.f32.mrf.mxu0
  %1122 = vmatprep.mubr.f32.mxu0 0.0
  %v1123 = vand.u32 %v100, 4294901760
  %1124 = vmatmul.mubr.f32.gmra.mxu0 %v1123
  %v1125 = vpop.f32.mrf.mxu0
  %v1126 = vadd.f32 %v999, %v1125
  %v1127 = vpop.f32.mrf.mxu0
  %1128 = vmatprep.mubr.f32.mxu0 0.0
  %v1129 = vand.u32 %v103, 4294901760
  %1130 = vmatmul.mubr.f32.gmra.mxu0 %v1129
  %v1131 = vpop.f32.mrf.mxu0
  %v1132 = vadd.f32 %v1009, %v1131
  %v1133 = vpop.f32.mrf.mxu0
  %1134 = vdwg.mxu0
  %1135 = vmatprep.subr.mxu0 0.0
  %1136 = vmatpush1.msra.mxu0 0.0
  %1137 = vmatprep.subr.mxu0 0.0
  %1138 = vmatpush1.msra.mxu0 0.0
  %1139 = vmatprep.subr.mxu0 0.0
  %1140 = vmatpush1.msra.mxu0 0.0
  %1141 = vmatprep.subr.mxu0 0.0
  %1142 = vmatpush1.msra.mxu0 0.0
  %1143 = vmatprep.subr.mxu0 0.0
  %1144 = vmatpush1.msra.mxu0 0.0
  %1145 = vmatprep.subr.mxu0 0.0
  %1146 = vmatpush1.msra.mxu0 0.0
  %1147 = vmatprep.subr.mxu0 0.0
  %1148 = vmatpush1.msra.mxu0 0.0
  %1149 = vmatprep.subr.mxu0 0.0
  %1150 = vmatpush1.msra.mxu0 0.0
  %1151 = vmatprep.subr.mxu0 0.0
  %1152 = vmatpush1.msra.mxu0 0.0
  %1153 = vmatprep.subr.mxu0 0.0
  %1154 = vmatpush1.msra.mxu0 0.0
  %1155 = vmatprep.subr.mxu0 0.0
  %1156 = vmatpush1.msra.mxu0 0.0
  %1157 = vmatprep.subr.mxu0 0.0
  %1158 = vmatpush1.msra.mxu0 0.0
  %1159 = vmatprep.subr.mxu0 0.0
  %1160 = vmatpush1.msra.mxu0 0.0
  %1161 = vmatprep.subr.mxu0 0.0
  %1162 = vmatpush1.msra.mxu0 0.0
  %1163 = vmatprep.subr.mxu0 0.0
  %v1164 = vand.u32 %v79, 4294901760
  %v1165 = vsub.f32 %v79, %v1164
  %1166 = vmatpush1.msra.mxu0 %v1165
  %1167 = vmatprep.subr.mxu0 0.0
  %v1168 = vand.u32 %v78, 4294901760
  %v1169 = vsub.f32 %v78, %v1168
  %1170 = vmatpush1.msra.mxu0 %v1169
  %1171 = vmatprep.subr.mxu0 0.0
  %1172 = vmatpush2.msra.mxu0 0.0
  %1173 = vmatprep.subr.mxu0 0.0
  %1174 = vmatpush2.msra.mxu0 0.0
  %1175 = vmatprep.subr.mxu0 0.0
  %1176 = vmatpush2.msra.mxu0 0.0
  %1177 = vmatprep.subr.mxu0 0.0
  %1178 = vmatpush2.msra.mxu0 0.0
  %1179 = vmatprep.subr.mxu0 0.0
  %1180 = vmatpush2.msra.mxu0 0.0
  %1181 = vmatprep.subr.mxu0 0.0
  %1182 = vmatpush2.msra.mxu0 0.0
  %1183 = vmatprep.subr.mxu0 0.0
  %1184 = vmatpush2.msra.mxu0 0.0
  %1185 = vmatprep.subr.mxu0 0.0
  %1186 = vmatpush2.msra.mxu0 0.0
  %1187 = vmatprep.subr.mxu0 0.0
  %1188 = vmatpush2.msra.mxu0 0.0
  %1189 = vmatprep.subr.mxu0 0.0
  %1190 = vmatpush2.msra.mxu0 0.0
  %1191 = vmatprep.subr.mxu0 0.0
  %1192 = vmatpush2.msra.mxu0 0.0
  %1193 = vmatprep.subr.mxu0 0.0
  %1194 = vmatpush2.msra.mxu0 0.0
  %1195 = vmatprep.subr.mxu0 0.0
  %1196 = vmatpush2.msra.mxu0 0.0
  %1197 = vmatprep.subr.mxu0 0.0
  %1198 = vmatpush2.msra.mxu0 0.0
  %1199 = vmatprep.subr.mxu0 0.0
  %1200 = vmatpush2.msra.mxu0 0.0
  %1201 = vmatprep.subr.mxu0 0.0
  %1202 = vmatpush2.msra.mxu0 0.0
  %1203 = vmatprep.mubr.f32.mxu0 0.0
  %v1204 = vand.u32 %v82, 4294901760
  %v1205 = vsub.f32 %v82, %v1204
  %1206 = vmatmul.mubr.f32.gmra.mxu0 %v1205
  %v1207 = vpop.f32.mrf.mxu0
  %v1208 = vadd.f32 %v1090, %v1207
  %v1209 = vpop.f32.mrf.mxu0
  %1210 = vmatprep.mubr.f32.mxu0 0.0
  %v1211 = vand.u32 %v85, 4294901760
  %v1212 = vsub.f32 %v85, %v1211
  %1213 = vmatmul.mubr.f32.gmra.mxu0 %v1212
  %v1214 = vpop.f32.mrf.mxu0
  %v1215 = vadd.f32 %v1096, %v1214
  %v1216 = vpop.f32.mrf.mxu0
  %1217 = vmatprep.mubr.f32.mxu0 0.0
  %v1218 = vand.u32 %v88, 4294901760
  %v1219 = vsub.f32 %v88, %v1218
  %1220 = vmatmul.mubr.f32.gmra.mxu0 %v1219
  %v1221 = vpop.f32.mrf.mxu0
  %v1222 = vadd.f32 %v1102, %v1221
  %v1223 = vpop.f32.mrf.mxu0
  %1224 = vmatprep.mubr.f32.mxu0 0.0
  %v1225 = vand.u32 %v91, 4294901760
  %v1226 = vsub.f32 %v91, %v1225
  %1227 = vmatmul.mubr.f32.gmra.mxu0 %v1226
  %v1228 = vpop.f32.mrf.mxu0
  %v1229 = vadd.f32 %v1108, %v1228
  %v1230 = vpop.f32.mrf.mxu0
  %1231 = vmatprep.mubr.f32.mxu0 0.0
  %v1232 = vand.u32 %v94, 4294901760
  %v1233 = vsub.f32 %v94, %v1232
  %1234 = vmatmul.mubr.f32.gmra.mxu0 %v1233
  %v1235 = vpop.f32.mrf.mxu0
  %v1236 = vadd.f32 %v1114, %v1235
  %v1237 = vpop.f32.mrf.mxu0
  %1238 = vmatprep.mubr.f32.mxu0 0.0
  %v1239 = vand.u32 %v97, 4294901760
  %v1240 = vsub.f32 %v97, %v1239
  %1241 = vmatmul.mubr.f32.gmra.mxu0 %v1240
  %v1242 = vpop.f32.mrf.mxu0
  %v1243 = vadd.f32 %v1120, %v1242
  %v1244 = vpop.f32.mrf.mxu0
  %1245 = vmatprep.mubr.f32.mxu0 0.0
  %v1246 = vand.u32 %v100, 4294901760
  %v1247 = vsub.f32 %v100, %v1246
  %1248 = vmatmul.mubr.f32.gmra.mxu0 %v1247
  %v1249 = vpop.f32.mrf.mxu0
  %v1250 = vadd.f32 %v1126, %v1249
  %v1251 = vpop.f32.mrf.mxu0
  %1252 = vmatprep.mubr.f32.mxu0 0.0
  %v1253 = vand.u32 %v103, 4294901760
  %v1254 = vsub.f32 %v103, %v1253
  %1255 = vmatmul.mubr.f32.gmra.mxu0 %v1254
  %v1256 = vpop.f32.mrf.mxu0
  %v1257 = vadd.f32 %v1132, %v1256
  %v1258 = vpop.f32.mrf.mxu0
  %1259 = vdwg.mxu0
  %1260 = vmatprep.subr.mxu0 0.0
  %1261 = vmatpush1.msra.mxu0 0.0
  %1262 = vmatprep.subr.mxu0 0.0
  %1263 = vmatpush1.msra.mxu0 0.0
  %1264 = vmatprep.subr.mxu0 0.0
  %1265 = vmatpush1.msra.mxu0 0.0
  %1266 = vmatprep.subr.mxu0 0.0
  %1267 = vmatpush1.msra.mxu0 0.0
  %1268 = vmatprep.subr.mxu0 0.0
  %1269 = vmatpush1.msra.mxu0 0.0
  %1270 = vmatprep.subr.mxu0 0.0
  %1271 = vmatpush1.msra.mxu0 0.0
  %1272 = vmatprep.subr.mxu0 0.0
  %1273 = vmatpush1.msra.mxu0 0.0
  %1274 = vmatprep.subr.mxu0 0.0
  %1275 = vmatpush1.msra.mxu0 0.0
  %1276 = vmatprep.subr.mxu0 0.0
  %1277 = vmatpush1.msra.mxu0 0.0
  %1278 = vmatprep.subr.mxu0 0.0
  %1279 = vmatpush1.msra.mxu0 0.0
  %1280 = vmatprep.subr.mxu0 0.0
  %1281 = vmatpush1.msra.mxu0 0.0
  %1282 = vmatprep.subr.mxu0 0.0
  %1283 = vmatpush1.msra.mxu0 0.0
  %1284 = vmatprep.subr.mxu0 0.0
  %1285 = vmatpush1.msra.mxu0 0.0
  %1286 = vmatprep.subr.mxu0 0.0
  %1287 = vmatpush1.msra.mxu0 0.0
  %1288 = vmatprep.subr.mxu0 0.0
  %v1289 = vand.u32 %v79, 4294901760
  %1290 = vmatpush1.msra.mxu0 %v1289
  %1291 = vmatprep.subr.mxu0 0.0
  %v1292 = vand.u32 %v78, 4294901760
  %1293 = vmatpush1.msra.mxu0 %v1292
  %1294 = vmatprep.subr.mxu0 0.0
  %1295 = vmatpush2.msra.mxu0 0.0
  %1296 = vmatprep.subr.mxu0 0.0
  %1297 = vmatpush2.msra.mxu0 0.0
  %1298 = vmatprep.subr.mxu0 0.0
  %1299 = vmatpush2.msra.mxu0 0.0
  %1300 = vmatprep.subr.mxu0 0.0
  %1301 = vmatpush2.msra.mxu0 0.0
  %1302 = vmatprep.subr.mxu0 0.0
  %1303 = vmatpush2.msra.mxu0 0.0
  %1304 = vmatprep.subr.mxu0 0.0
  %1305 = vmatpush2.msra.mxu0 0.0
  %1306 = vmatprep.subr.mxu0 0.0
  %1307 = vmatpush2.msra.mxu0 0.0
  %1308 = vmatprep.subr.mxu0 0.0
  %1309 = vmatpush2.msra.mxu0 0.0
  %1310 = vmatprep.subr.mxu0 0.0
  %1311 = vmatpush2.msra.mxu0 0.0
  %1312 = vmatprep.subr.mxu0 0.0
  %1313 = vmatpush2.msra.mxu0 0.0
  %1314 = vmatprep.subr.mxu0 0.0
  %1315 = vmatpush2.msra.mxu0 0.0
  %1316 = vmatprep.subr.mxu0 0.0
  %1317 = vmatpush2.msra.mxu0 0.0
  %1318 = vmatprep.subr.mxu0 0.0
  %1319 = vmatpush2.msra.mxu0 0.0
  %1320 = vmatprep.subr.mxu0 0.0
  %1321 = vmatpush2.msra.mxu0 0.0
  %1322 = vmatprep.subr.mxu0 0.0
  %1323 = vmatpush2.msra.mxu0 0.0
  %1324 = vmatprep.subr.mxu0 0.0
  %1325 = vmatpush2.msra.mxu0 0.0
  %1326 = vmatprep.mubr.f32.mxu0 0.0
  %v1327 = vand.u32 %v82, 4294901760
  %v1328 = vsub.f32 %v82, %v1327
  %v1329 = vand.u32 %v1328, 4294901760
  %1330 = vmatmul.mubr.f32.gmra.mxu0 %v1329
  %v1331 = vpop.f32.mrf.mxu0
  %v1332 = vadd.f32 %v1208, %v1331
  %v1333 = vpop.f32.mrf.mxu0
  %1334 = vmatprep.mubr.f32.mxu0 0.0
  %v1335 = vand.u32 %v85, 4294901760
  %v1336 = vsub.f32 %v85, %v1335
  %v1337 = vand.u32 %v1336, 4294901760
  %1338 = vmatmul.mubr.f32.gmra.mxu0 %v1337
  %v1339 = vpop.f32.mrf.mxu0
  %v1340 = vadd.f32 %v1215, %v1339
  %v1341 = vpop.f32.mrf.mxu0
  %1342 = vmatprep.mubr.f32.mxu0 0.0
  %v1343 = vand.u32 %v88, 4294901760
  %v1344 = vsub.f32 %v88, %v1343
  %v1345 = vand.u32 %v1344, 4294901760
  %1346 = vmatmul.mubr.f32.gmra.mxu0 %v1345
  %v1347 = vpop.f32.mrf.mxu0
  %v1348 = vadd.f32 %v1222, %v1347
  %v1349 = vpop.f32.mrf.mxu0
  %1350 = vmatprep.mubr.f32.mxu0 0.0
  %v1351 = vand.u32 %v91, 4294901760
  %v1352 = vsub.f32 %v91, %v1351
  %v1353 = vand.u32 %v1352, 4294901760
  %1354 = vmatmul.mubr.f32.gmra.mxu0 %v1353
  %v1355 = vpop.f32.mrf.mxu0
  %v1356 = vadd.f32 %v1229, %v1355
  %v1357 = vpop.f32.mrf.mxu0
  %1358 = vmatprep.mubr.f32.mxu0 0.0
  %v1359 = vand.u32 %v94, 4294901760
  %v1360 = vsub.f32 %v94, %v1359
  %v1361 = vand.u32 %v1360, 4294901760
  %1362 = vmatmul.mubr.f32.gmra.mxu0 %v1361
  %v1363 = vpop.f32.mrf.mxu0
  %v1364 = vadd.f32 %v1236, %v1363
  %v1365 = vpop.f32.mrf.mxu0
  %1366 = vmatprep.mubr.f32.mxu0 0.0
  %v1367 = vand.u32 %v97, 4294901760
  %v1368 = vsub.f32 %v97, %v1367
  %v1369 = vand.u32 %v1368, 4294901760
  %1370 = vmatmul.mubr.f32.gmra.mxu0 %v1369
  %v1371 = vpop.f32.mrf.mxu0
  %v1372 = vadd.f32 %v1243, %v1371
  %v1373 = vpop.f32.mrf.mxu0
  %1374 = vmatprep.mubr.f32.mxu0 0.0
  %v1375 = vand.u32 %v100, 4294901760
  %v1376 = vsub.f32 %v100, %v1375
  %v1377 = vand.u32 %v1376, 4294901760
  %1378 = vmatmul.mubr.f32.gmra.mxu0 %v1377
  %v1379 = vpop.f32.mrf.mxu0
  %v1380 = vadd.f32 %v1250, %v1379
  %v1381 = vpop.f32.mrf.mxu0
  %1382 = vmatprep.mubr.f32.mxu0 0.0
  %v1383 = vand.u32 %v103, 4294901760
  %v1384 = vsub.f32 %v103, %v1383
  %v1385 = vand.u32 %v1384, 4294901760
  %1386 = vmatmul.mubr.f32.gmra.mxu0 %v1385
  %v1387 = vpop.f32.mrf.mxu0
  %v1388 = vadd.f32 %v1257, %v1387
  %v1389 = vpop.f32.mrf.mxu0
  %1390 = vdwg.mxu0
  %1391 = vmatprep.subr.mxu0 0.0
  %1392 = vmatpush1.msra.mxu0 0.0
  %1393 = vmatprep.subr.mxu0 0.0
  %1394 = vmatpush1.msra.mxu0 0.0
  %1395 = vmatprep.subr.mxu0 0.0
  %1396 = vmatpush1.msra.mxu0 0.0
  %1397 = vmatprep.subr.mxu0 0.0
  %1398 = vmatpush1.msra.mxu0 0.0
  %1399 = vmatprep.subr.mxu0 0.0
  %1400 = vmatpush1.msra.mxu0 0.0
  %1401 = vmatprep.subr.mxu0 0.0
  %1402 = vmatpush1.msra.mxu0 0.0
  %1403 = vmatprep.subr.mxu0 0.0
  %1404 = vmatpush1.msra.mxu0 0.0
  %1405 = vmatprep.subr.mxu0 0.0
  %1406 = vmatpush1.msra.mxu0 0.0
  %1407 = vmatprep.subr.mxu0 0.0
  %1408 = vmatpush1.msra.mxu0 0.0
  %1409 = vmatprep.subr.mxu0 0.0
  %1410 = vmatpush1.msra.mxu0 0.0
  %1411 = vmatprep.subr.mxu0 0.0
  %1412 = vmatpush1.msra.mxu0 0.0
  %1413 = vmatprep.subr.mxu0 0.0
  %1414 = vmatpush1.msra.mxu0 0.0
  %1415 = vmatprep.subr.mxu0 0.0
  %1416 = vmatpush1.msra.mxu0 0.0
  %1417 = vmatprep.subr.mxu0 0.0
  %1418 = vmatpush1.msra.mxu0 0.0
  %1419 = vmatprep.subr.mxu0 0.0
  %v1420 = vand.u32 %v79, 4294901760
  %v1421 = vsub.f32 %v79, %v1420
  %v1422 = vand.u32 %v1421, 4294901760
  %1423 = vmatpush1.msra.mxu0 %v1422
  %1424 = vmatprep.subr.mxu0 0.0
  %v1425 = vand.u32 %v78, 4294901760
  %v1426 = vsub.f32 %v78, %v1425
  %v1427 = vand.u32 %v1426, 4294901760
  %1428 = vmatpush1.msra.mxu0 %v1427
  %1429 = vmatprep.subr.mxu0 0.0
  %1430 = vmatpush2.msra.mxu0 0.0
  %1431 = vmatprep.subr.mxu0 0.0
  %1432 = vmatpush2.msra.mxu0 0.0
  %1433 = vmatprep.subr.mxu0 0.0
  %1434 = vmatpush2.msra.mxu0 0.0
  %1435 = vmatprep.subr.mxu0 0.0
  %1436 = vmatpush2.msra.mxu0 0.0
  %1437 = vmatprep.subr.mxu0 0.0
  %1438 = vmatpush2.msra.mxu0 0.0
  %1439 = vmatprep.subr.mxu0 0.0
  %1440 = vmatpush2.msra.mxu0 0.0
  %1441 = vmatprep.subr.mxu0 0.0
  %1442 = vmatpush2.msra.mxu0 0.0
  %1443 = vmatprep.subr.mxu0 0.0
  %1444 = vmatpush2.msra.mxu0 0.0
  %1445 = vmatprep.subr.mxu0 0.0
  %1446 = vmatpush2.msra.mxu0 0.0
  %1447 = vmatprep.subr.mxu0 0.0
  %1448 = vmatpush2.msra.mxu0 0.0
  %1449 = vmatprep.subr.mxu0 0.0
  %1450 = vmatpush2.msra.mxu0 0.0
  %1451 = vmatprep.subr.mxu0 0.0
  %1452 = vmatpush2.msra.mxu0 0.0
  %1453 = vmatprep.subr.mxu0 0.0
  %1454 = vmatpush2.msra.mxu0 0.0
  %1455 = vmatprep.subr.mxu0 0.0
  %1456 = vmatpush2.msra.mxu0 0.0
  %1457 = vmatprep.subr.mxu0 0.0
  %1458 = vmatpush2.msra.mxu0 0.0
  %1459 = vmatprep.subr.mxu0 0.0
  %1460 = vmatpush2.msra.mxu0 0.0
  %1461 = vmatprep.mubr.f32.mxu0 0.0
  %v1462 = vand.u32 %v82, 4294901760
  %1463 = vmatmul.mubr.f32.gmra.mxu0 %v1462
  %v1464 = vpop.f32.mrf.mxu0
  %v1465 = vadd.f32 %v1332, %v1464
  %v1466 = vpop.f32.mrf.mxu0
  %1467 = vmatprep.mubr.f32.mxu0 0.0
  %v1468 = vand.u32 %v85, 4294901760
  %1469 = vmatmul.mubr.f32.gmra.mxu0 %v1468
  %v1470 = vpop.f32.mrf.mxu0
  %v1471 = vadd.f32 %v1340, %v1470
  %v1472 = vpop.f32.mrf.mxu0
  %1473 = vmatprep.mubr.f32.mxu0 0.0
  %v1474 = vand.u32 %v88, 4294901760
  %1475 = vmatmul.mubr.f32.gmra.mxu0 %v1474
  %v1476 = vpop.f32.mrf.mxu0
  %v1477 = vadd.f32 %v1348, %v1476
  %v1478 = vpop.f32.mrf.mxu0
  %1479 = vmatprep.mubr.f32.mxu0 0.0
  %v1480 = vand.u32 %v91, 4294901760
  %1481 = vmatmul.mubr.f32.gmra.mxu0 %v1480
  %v1482 = vpop.f32.mrf.mxu0
  %v1483 = vadd.f32 %v1356, %v1482
  %v1484 = vpop.f32.mrf.mxu0
  %1485 = vmatprep.mubr.f32.mxu0 0.0
  %v1486 = vand.u32 %v94, 4294901760
  %1487 = vmatmul.mubr.f32.gmra.mxu0 %v1486
  %v1488 = vpop.f32.mrf.mxu0
  %v1489 = vadd.f32 %v1364, %v1488
  %v1490 = vpop.f32.mrf.mxu0
  %1491 = vmatprep.mubr.f32.mxu0 0.0
  %v1492 = vand.u32 %v97, 4294901760
  %1493 = vmatmul.mubr.f32.gmra.mxu0 %v1492
  %v1494 = vpop.f32.mrf.mxu0
  %v1495 = vadd.f32 %v1372, %v1494
  %v1496 = vpop.f32.mrf.mxu0
  %1497 = vmatprep.mubr.f32.mxu0 0.0
  %v1498 = vand.u32 %v100, 4294901760
  %1499 = vmatmul.mubr.f32.gmra.mxu0 %v1498
  %v1500 = vpop.f32.mrf.mxu0
  %v1501 = vadd.f32 %v1380, %v1500
  %v1502 = vpop.f32.mrf.mxu0
  %1503 = vmatprep.mubr.f32.mxu0 0.0
  %v1504 = vand.u32 %v103, 4294901760
  %1505 = vmatmul.mubr.f32.gmra.mxu0 %v1504
  %v1506 = vpop.f32.mrf.mxu0
  %v1507 = vadd.f32 %v1388, %v1506
  %v1508 = vpop.f32.mrf.mxu0
  %1509 = vdwg.mxu0
  %1510 = vmatprep.subr.mxu0 0.0
  %1511 = vmatpush1.msra.mxu0 0.0
  %1512 = vmatprep.subr.mxu0 0.0
  %1513 = vmatpush1.msra.mxu0 0.0
  %1514 = vmatprep.subr.mxu0 0.0
  %1515 = vmatpush1.msra.mxu0 0.0
  %1516 = vmatprep.subr.mxu0 0.0
  %1517 = vmatpush1.msra.mxu0 0.0
  %1518 = vmatprep.subr.mxu0 0.0
  %1519 = vmatpush1.msra.mxu0 0.0
  %1520 = vmatprep.subr.mxu0 0.0
  %1521 = vmatpush1.msra.mxu0 0.0
  %1522 = vmatprep.subr.mxu0 0.0
  %1523 = vmatpush1.msra.mxu0 0.0
  %1524 = vmatprep.subr.mxu0 0.0
  %1525 = vmatpush1.msra.mxu0 0.0
  %1526 = vmatprep.subr.mxu0 0.0
  %1527 = vmatpush1.msra.mxu0 0.0
  %1528 = vmatprep.subr.mxu0 0.0
  %1529 = vmatpush1.msra.mxu0 0.0
  %1530 = vmatprep.subr.mxu0 0.0
  %1531 = vmatpush1.msra.mxu0 0.0
  %1532 = vmatprep.subr.mxu0 0.0
  %1533 = vmatpush1.msra.mxu0 0.0
  %1534 = vmatprep.subr.mxu0 0.0
  %1535 = vmatpush1.msra.mxu0 0.0
  %1536 = vmatprep.subr.mxu0 0.0
  %1537 = vmatpush1.msra.mxu0 0.0
  %1538 = vmatprep.subr.mxu0 0.0
  %v1539 = vand.u32 %v79, 4294901760
  %1540 = vmatpush1.msra.mxu0 %v1539
  %1541 = vmatprep.subr.mxu0 0.0
  %v1542 = vand.u32 %v78, 4294901760
  %1543 = vmatpush1.msra.mxu0 %v1542
  %1544 = vmatprep.subr.mxu0 0.0
  %1545 = vmatpush2.msra.mxu0 0.0
  %1546 = vmatprep.subr.mxu0 0.0
  %1547 = vmatpush2.msra.mxu0 0.0
  %1548 = vmatprep.subr.mxu0 0.0
  %1549 = vmatpush2.msra.mxu0 0.0
  %1550 = vmatprep.subr.mxu0 0.0
  %1551 = vmatpush2.msra.mxu0 0.0
  %1552 = vmatprep.subr.mxu0 0.0
  %1553 = vmatpush2.msra.mxu0 0.0
  %1554 = vmatprep.subr.mxu0 0.0
  %1555 = vmatpush2.msra.mxu0 0.0
  %1556 = vmatprep.subr.mxu0 0.0
  %1557 = vmatpush2.msra.mxu0 0.0
  %1558 = vmatprep.subr.mxu0 0.0
  %1559 = vmatpush2.msra.mxu0 0.0
  %1560 = vmatprep.subr.mxu0 0.0
  %1561 = vmatpush2.msra.mxu0 0.0
  %1562 = vmatprep.subr.mxu0 0.0
  %1563 = vmatpush2.msra.mxu0 0.0
  %1564 = vmatprep.subr.mxu0 0.0
  %1565 = vmatpush2.msra.mxu0 0.0
  %1566 = vmatprep.subr.mxu0 0.0
  %1567 = vmatpush2.msra.mxu0 0.0
  %1568 = vmatprep.subr.mxu0 0.0
  %1569 = vmatpush2.msra.mxu0 0.0
  %1570 = vmatprep.subr.mxu0 0.0
  %1571 = vmatpush2.msra.mxu0 0.0
  %1572 = vmatprep.subr.mxu0 0.0
  %1573 = vmatpush2.msra.mxu0 0.0
  %1574 = vmatprep.subr.mxu0 0.0
  %1575 = vmatpush2.msra.mxu0 0.0
  %1576 = vmatprep.mubr.f32.mxu0 0.0
  %v1577 = vand.u32 %v82, 4294901760
  %1578 = vmatmul.mubr.f32.gmra.mxu0 %v1577
  %v1579 = vpop.f32.mrf.mxu0
  %v1580 = vadd.f32 %v1465, %v1579
  %v1581 = vpop.f32.mrf.mxu0
  %1582 = vmatprep.mubr.f32.mxu0 0.0
  %v1583 = vand.u32 %v85, 4294901760
  %1584 = vmatmul.mubr.f32.gmra.mxu0 %v1583
  %v1585 = vpop.f32.mrf.mxu0
  %v1586 = vadd.f32 %v1471, %v1585
  %v1587 = vpop.f32.mrf.mxu0
  %1588 = vmatprep.mubr.f32.mxu0 0.0
  %v1589 = vand.u32 %v88, 4294901760
  %1590 = vmatmul.mubr.f32.gmra.mxu0 %v1589
  %v1591 = vpop.f32.mrf.mxu0
  %v1592 = vadd.f32 %v1477, %v1591
  %v1593 = vpop.f32.mrf.mxu0
  %1594 = vmatprep.mubr.f32.mxu0 0.0
  %v1595 = vand.u32 %v91, 4294901760
  %1596 = vmatmul.mubr.f32.gmra.mxu0 %v1595
  %v1597 = vpop.f32.mrf.mxu0
  %v1598 = vadd.f32 %v1483, %v1597
  %v1599 = vpop.f32.mrf.mxu0
  %1600 = vmatprep.mubr.f32.mxu0 0.0
  %v1601 = vand.u32 %v94, 4294901760
  %1602 = vmatmul.mubr.f32.gmra.mxu0 %v1601
  %v1603 = vpop.f32.mrf.mxu0
  %v1604 = vadd.f32 %v1489, %v1603
  %v1605 = vpop.f32.mrf.mxu0
  %1606 = vmatprep.mubr.f32.mxu0 0.0
  %v1607 = vand.u32 %v97, 4294901760
  %1608 = vmatmul.mubr.f32.gmra.mxu0 %v1607
  %v1609 = vpop.f32.mrf.mxu0
  %v1610 = vadd.f32 %v1495, %v1609
  %v1611 = vpop.f32.mrf.mxu0
  %1612 = vmatprep.mubr.f32.mxu0 0.0
  %v1613 = vand.u32 %v100, 4294901760
  %1614 = vmatmul.mubr.f32.gmra.mxu0 %v1613
  %v1615 = vpop.f32.mrf.mxu0
  %v1616 = vadd.f32 %v1501, %v1615
  %v1617 = vpop.f32.mrf.mxu0
  %1618 = vmatprep.mubr.f32.mxu0 0.0
  %v1619 = vand.u32 %v103, 4294901760
  %1620 = vmatmul.mubr.f32.gmra.mxu0 %v1619
  %v1621 = vpop.f32.mrf.mxu0
  %v1622 = vadd.f32 %v1507, %v1621
  %v1623 = vpop.f32.mrf.mxu0
  %1624 = vdwg.mxu0
  %v1625 = vmax.f32 %v820, %v1580
  %v1626 = vmax.f32 %v826, %v1586
  %v1627 = vmax.f32 %v832, %v1592
  %v1628 = vmax.f32 %v838, %v1598
  %v1629 = vmax.f32 %v844, %v1604
  %v1630 = vmax.f32 %v850, %v1610
  %v1631 = vmax.f32 %v856, %v1616
  %v1632 = vmax.f32 %v862, %v1622
  %vm1633 = vcmask 64512
  %1634 = vst.msk [vmem:[%s1] sm:$0xff] %vm1633, %v1625
  %1635 = vst.msk [vmem:[%s1 + $0x8] sm:$0xff] %vm1633, %v1626
  %1636 = vst.msk [vmem:[%s1 + $0x10] sm:$0xff] %vm1633, %v1627
  %1637 = vst.msk [vmem:[%s1 + $0x18] sm:$0xff] %vm1633, %v1628
  %1638 = vst.msk [vmem:[%s1 + $0x20] sm:$0xff] %vm1633, %v1629
  %1639 = vst.msk [vmem:[%s1 + $0x28] sm:$0xff] %vm1633, %v1630
  %1640 = vst.msk [vmem:[%s1 + $0x30] sm:$0xff] %vm1633, %v1631
  %1641 = vst.msk [vmem:[%s1 + $0x38] sm:$0xff] %vm1633, %v1632
  // Predicated region
  $region6: #{tpu_custom_call.1} parent=0 // pred_check
    _
  $region7: #{tpu_custom_call.1} parent=0 // pred_check_branch
    %1643 = sbr.rel (0) target = $region9
  $region8: #{tpu_custom_call.1} parent=0 // pred_region
    _
  $region9: #{tpu_custom_call.1} parent=0 // pred_fallthru
    _
  // Predicated region
  $region10: #{tpu_custom_call.1} parent=0 // pred_check
    _
  $region11: #{tpu_custom_call.1} parent=0 // pred_check_branch
    %1645 = sbr.rel (0) target = $region13
  $region12: #{tpu_custom_call.1} parent=0 // pred_region
    _
  $region13: #{tpu_custom_call.1} parent=0 // pred_fallthru
    _

</llo_original>
